<compile_context>
chip_gen: v5e
topology: v5e:2x2
jax: 0.10.0
libtpu: 0.0.40
codegen_flags: <defaults>
</compile_context>

<pallas_src>
import math

import jax
import jax.numpy as jnp
from jax import lax
from jax.experimental import pallas as pl
from jax.experimental.pallas import tpu as pltpu

D_MODEL = 32
NUM_HEADS = 4
HEAD_DIM = D_MODEL // NUM_HEADS
HIDDEN_D = 64
EPS = 1e-5
NEG_BIG = -1e30  # finite "masked" score: no NaN hazard even for all-masked rows


# ---------------- math helpers (pure jnp; usable inside the kernel) ---------

def _layernorm(x, gamma, beta):
    mu = jnp.mean(x, axis=-1, keepdims=True)
    var = jnp.mean(jnp.square(x - mu), axis=-1, keepdims=True)
    return (x - mu) * lax.rsqrt(var + EPS) * gamma + beta


def _heads_attention(q, k, v, bias):
    """Batched multi-head attention core (no output projection).

    q: (B, Sq, D) already projected AND scaled; k, v: (B, Sk, D) projected;
    bias: (B, 1, Sk) additive mask (0 or -1e30).  Returns (B, Sq, D).
    """
    heads = []
    for h in range(NUM_HEADS):
        sl = slice(h * HEAD_DIM, (h + 1) * HEAD_DIM)
        s = jnp.einsum('bqd,bkd->bqk', q[:, :, sl], k[:, :, sl],
                       preferred_element_type=jnp.float32) + bias
        m = jnp.max(s, axis=-1, keepdims=True)
        e = jnp.exp(s - m)
        p = e * pl.reciprocal(jnp.sum(e, axis=-1, keepdims=True), approx=True)
        heads.append(jnp.einsum('bqk,bkd->bqd', p, v[:, :, sl],
                                preferred_element_type=jnp.float32))
    return jnp.concatenate(heads, axis=-1)


# ---------------------------- Pallas kernel ---------------------------------

def decoder_layer_kernel(
    x_ref, enc_ref, tgt_mask_ref, src_mask_ref,
    sa_wqkv_ref, sa_bqkv_ref, sa_wo_ref, sa_bo_ref,
    ca_wq_ref, ca_bq_ref, ca_wkv_ref, ca_bkv_ref, ca_wo_ref, ca_bo_ref,
    n1_g_ref, n1_b_ref, n2_g_ref, n2_b_ref, n3_g_ref, n3_b_ref,
    w1_ref, b1_ref, w2_ref, b2_ref,
    out_ref,
):
    B, S, D = x_ref.shape
    Se = enc_ref.shape[1]

    # Residual stream kept 2-D (B*S, D): all row-wise ops (projections,
    # LayerNorm, FFN) run as plain 2-D matmuls / elementwise.
    x2 = x_ref[...].reshape(B * S, D)
    enc2 = enc_ref[...].reshape(B * Se, D)

    # Additive key-padding biases, computed once (outside the head loop).
    zero = jnp.float32(0.0)
    neg = jnp.float32(NEG_BIG)
    tgt_bias = jnp.where(tgt_mask_ref[...] > 0.5, neg, zero)  # (B, 1, S)
    src_bias = jnp.where(src_mask_ref[...] > 0.5, neg, zero)  # (B, 1, Se)

    # ---- 1) self-attention + residual + LayerNorm (dropout = identity) ----
    qkv = jnp.dot(x2, sa_wqkv_ref[...],
                  preferred_element_type=jnp.float32) + sa_bqkv_ref[...]
    q = qkv[:, 0:D].reshape(B, S, D)          # scale already folded into W_q
    k = qkv[:, D:2 * D].reshape(B, S, D)
    v = qkv[:, 2 * D:3 * D].reshape(B, S, D)
    ctx = _heads_attention(q, k, v, tgt_bias).reshape(B * S, D)
    a = jnp.dot(ctx, sa_wo_ref[...],
                preferred_element_type=jnp.float32) + sa_bo_ref[...]
    x2 = _layernorm(x2 + a, n1_g_ref[...], n1_b_ref[...])

    # ---- 2) cross-attention + residual + LayerNorm ----
    q = (jnp.dot(x2, ca_wq_ref[...],
                 preferred_element_type=jnp.float32) + ca_bq_ref[...]
         ).reshape(B, S, D)
    kv = jnp.dot(enc2, ca_wkv_ref[...],
                 preferred_element_type=jnp.float32) + ca_bkv_ref[...]
    k = kv[:, 0:D].reshape(B, Se, D)
    v = kv[:, D:2 * D].reshape(B, Se, D)
    ctx = _heads_attention(q, k, v, src_bias).reshape(B * S, D)
    a = jnp.dot(ctx, ca_wo_ref[...],
                preferred_element_type=jnp.float32) + ca_bo_ref[...]
    x2 = _layernorm(x2 + a, n2_g_ref[...], n2_b_ref[...])

    # ---- 3) position-wise FFN + residual + LayerNorm ----
    h = jnp.maximum(
        jnp.dot(x2, w1_ref[...], preferred_element_type=jnp.float32)
        + b1_ref[...], 0.0)
    f = jnp.dot(h, w2_ref[...], preferred_element_type=jnp.float32) + b2_ref[...]
    x2 = _layernorm(x2 + f, n3_g_ref[...], n3_b_ref[...])

    out_ref[...] = x2.reshape(B, S, D)


# ------------------------------ wrapper --------------------------------------

def _prep_params(p):
    """Host-side: pre-transpose to (in, out), fuse QKV / KV, fold softmax scale."""
    d = D_MODEL
    scale = 1.0 / math.sqrt(HEAD_DIM)

    def split_in_proj(w_in, b_in):
        wq, wk, wv = w_in[0:d].T, w_in[d:2 * d].T, w_in[2 * d:3 * d].T
        bq, bk, bv = b_in[:, 0:d], b_in[:, d:2 * d], b_in[:, 2 * d:3 * d]
        return (wq * scale, bq * scale), (wk, bk), (wv, bv)

    sq, sk, sv = split_in_proj(p["sa_w_in"], p["sa_b_in"])
    cq, ck, cv = split_in_proj(p["ca_w_in"], p["ca_b_in"])

    return [
        jnp.concatenate([sq[0], sk[0], sv[0]], axis=1),   # sa_wqkv (D, 3D)
        jnp.concatenate([sq[1], sk[1], sv[1]], axis=1),   # sa_bqkv (1, 3D)
        p["sa_w_out"].T, p["sa_b_out"],                   # sa_wo (D, D), sa_bo (1, D)
        cq[0], cq[1],                                     # ca_wq (D, D), ca_bq (1, D)
        jnp.concatenate([ck[0], cv[0]], axis=1),          # ca_wkv (D, 2D)
        jnp.concatenate([ck[1], cv[1]], axis=1),          # ca_bkv (1, 2D)
        p["ca_w_out"].T, p["ca_b_out"],                   # ca_wo (D, D), ca_bo (1, D)
        p["n1_g"], p["n1_b"], p["n2_g"], p["n2_b"], p["n3_g"], p["n3_b"],
        p["ffn_w1"].T, p["ffn_b1"],                       # w1 (D, Hd), b1 (1, Hd)
        p["ffn_w2"].T, p["ffn_b2"],                       # w2 (Hd, D), b2 (1, D)
    ]


@jax.jit
def decoder_layer(x, enc_out, src_mask, tgt_mask, params):
    """x: (B, S, D), enc_out: (B, Se, D), masks: (B, 1, S{,e}) float {0,1}."""
    B, S, D = x.shape
    inputs = [x, enc_out, tgt_mask, src_mask] + _prep_params(params)
    vmem = pl.BlockSpec(memory_space=pltpu.MemorySpace.VMEM)
    return pl.pallas_call(
        decoder_layer_kernel,
        out_shape=jax.ShapeDtypeStruct((B, S, D), jnp.float32),
        in_specs=[vmem] * len(inputs),
        out_specs=vmem,
    )(*inputs)


# -------------------------- pure-JAX reference ------------------------------

def _ref_mha(q_in, kv_in, w_in, b_in, w_out, b_out, key_mask):
    d = D_MODEL
    q = q_in @ w_in[0:d].T + b_in[:, 0:d]
    k = kv_in @ w_in[d:2 * d].T + b_in[:, d:2 * d]
    v = kv_in @ w_in[2 * d:3 * d].T + b_in[:, 2 * d:3 * d]
    scale = 1.0 / math.sqrt(HEAD_DIM)
    outs = []
    for h in range(NUM_HEADS):
        sl = slice(h * HEAD_DIM, (h + 1) * HEAD_DIM)
        s = (q[:, sl] @ k[:, sl].T) * scale
        s = jnp.where(key_mask > 0.5, NEG_BIG, s)
        p = jax.nn.softmax(s, axis=-1)
        outs.append(p @ v[:, sl])
    o = jnp.concatenate(outs, axis=-1)
    return o @ w_out.T + b_out


def _ref_one(x, enc, tgt_m, src_m, p):
    a = _ref_mha(x, x, p["sa_w_in"], p["sa_b_in"], p["sa_w_out"], p["sa_b_out"], tgt_m)
    x = _layernorm(x + a, p["n1_g"], p["n1_b"])
    a = _ref_mha(x, enc, p["ca_w_in"], p["ca_b_in"], p["ca_w_out"], p["ca_b_out"], src_m)
    x = _layernorm(x + a, p["n2_g"], p["n2_b"])
    h = jnp.maximum(x @ p["ffn_w1"].T + p["ffn_b1"], 0.0)
    f = h @ p["ffn_w2"].T + p["ffn_b2"]
    return _layernorm(x + f, p["n3_g"], p["n3_b"])


# ------------------------------- main ----------------------------------------

if __name__ == "__main__":
    B, S, Se, D, Hd = 2, 8, 8, D_MODEL, HIDDEN_D

    key = jax.random.PRNGKey(0)
    ks = jax.random.split(key, 16)

    def init(k, shape, scale=0.1):
        return (scale * jax.random.normal(k, shape)).astype(jnp.float32)

    params = {
        "sa_w_in": init(ks[0], (3 * D, D)), "sa_b_in": init(ks[1], (1, 3 * D)),
        "sa_w_out": init(ks[2], (D, D)),    "sa_b_out": init(ks[3], (1, D)),
        "ca_w_in": init(ks[4], (3 * D, D)), "ca_b_in": init(ks[5], (1, 3 * D)),
        "ca_w_out": init(ks[6], (D, D)),    "ca_b_out": init(ks[7], (1, D)),
        "n1_g": jnp.ones((1, D), jnp.float32), "n1_b": jnp.zeros((1, D), jnp.float32),
        "n2_g": jnp.ones((1, D), jnp.float32), "n2_b": jnp.zeros((1, D), jnp.float32),
        "n3_g": jnp.ones((1, D), jnp.float32), "n3_b": jnp.zeros((1, D), jnp.float32),
        "ffn_w1": init(ks[8], (Hd, D)), "ffn_b1": init(ks[9], (1, Hd)),
        "ffn_w2": init(ks[10], (D, Hd)), "ffn_b2": init(ks[11], (1, D)),
    }

    x = init(ks[12], (B, S, D), scale=1.0)
    enc_out = init(ks[13], (B, Se, D), scale=1.0)
    # key-padding masks: 1.0 = masked key (never a fully-masked row here)
    tgt_mask = jnp.zeros((B, 1, S), jnp.float32).at[:, :, -1].set(1.0)
    src_mask = jnp.zeros((B, 1, Se), jnp.float32).at[0, :, 0].set(1.0)

    out = decoder_layer(x, enc_out, src_mask, tgt_mask, params)
    out = jax.block_until_ready(out)

    ref = jax.vmap(_ref_one, in_axes=(0, 0, 0, 0, None))(x, enc_out, tgt_mask, src_mask, params)
    assert out.shape == (B, S, D)
    assert jnp.allclose(out, ref, atol=2e-3, rtol=2e-3), "kernel mismatch vs reference"

    print("KERNEL_OK")
</pallas_src>

<mosaic_0001>
module attributes {stable_mosaic.version = 11 : i64} {
  func.func @decoder_layer_kernel(%arg0: memref<2x8x32xf32, #tpu.memory_space<vmem>>, %arg1: memref<2x8x32xf32, #tpu.memory_space<vmem>>, %arg2: memref<2x1x8xf32, #tpu.memory_space<vmem>>, %arg3: memref<2x1x8xf32, #tpu.memory_space<vmem>>, %arg4: memref<32x96xf32, #tpu.memory_space<vmem>>, %arg5: memref<1x96xf32, #tpu.memory_space<vmem>>, %arg6: memref<32x32xf32, #tpu.memory_space<vmem>>, %arg7: memref<1x32xf32, #tpu.memory_space<vmem>>, %arg8: memref<32x32xf32, #tpu.memory_space<vmem>>, %arg9: memref<1x32xf32, #tpu.memory_space<vmem>>, %arg10: memref<32x64xf32, #tpu.memory_space<vmem>>, %arg11: memref<1x64xf32, #tpu.memory_space<vmem>>, %arg12: memref<32x32xf32, #tpu.memory_space<vmem>>, %arg13: memref<1x32xf32, #tpu.memory_space<vmem>>, %arg14: memref<1x32xf32, #tpu.memory_space<vmem>>, %arg15: memref<1x32xf32, #tpu.memory_space<vmem>>, %arg16: memref<1x32xf32, #tpu.memory_space<vmem>>, %arg17: memref<1x32xf32, #tpu.memory_space<vmem>>, %arg18: memref<1x32xf32, #tpu.memory_space<vmem>>, %arg19: memref<1x32xf32, #tpu.memory_space<vmem>>, %arg20: memref<32x64xf32, #tpu.memory_space<vmem>>, %arg21: memref<1x64xf32, #tpu.memory_space<vmem>>, %arg22: memref<64x32xf32, #tpu.memory_space<vmem>>, %arg23: memref<1x32xf32, #tpu.memory_space<vmem>>, %arg24: memref<2x8x32xf32, #tpu.memory_space<vmem>>) attributes {dimension_semantics = [], scalar_prefetch = 0 : i64, scratch_operands = 0 : i64, tpu.core_type = #tpu.core_type<tc>} {
    %c0 = arith.constant 0 : index
    %c0_0 = arith.constant 0 : index
    %c0_1 = arith.constant 0 : index
    %0 = vector.load %arg0[%c0, %c0_0, %c0_1] : memref<2x8x32xf32, #tpu.memory_space<vmem>>, vector<2x8x32xf32>
    %1 = vector.shape_cast %0 : vector<2x8x32xf32> to vector<16x32xf32>
    %c0_2 = arith.constant 0 : index
    %c0_3 = arith.constant 0 : index
    %c0_4 = arith.constant 0 : index
    %2 = vector.load %arg1[%c0_2, %c0_3, %c0_4] : memref<2x8x32xf32, #tpu.memory_space<vmem>>, vector<2x8x32xf32>
    %3 = vector.shape_cast %2 : vector<2x8x32xf32> to vector<16x32xf32>
    %c0_5 = arith.constant 0 : index
    %c0_6 = arith.constant 0 : index
    %c0_7 = arith.constant 0 : index
    %4 = vector.load %arg2[%c0_5, %c0_6, %c0_7] : memref<2x1x8xf32, #tpu.memory_space<vmem>>, vector<2x1x8xf32>
    %cst = arith.constant 5.000000e-01 : f32
    %5 = vector.broadcast %cst : f32 to vector<2x1x8xf32>
    %6 = arith.cmpf ogt, %4, %5 : vector<2x1x8xf32>
    %cst_8 = arith.constant -1.000000e+30 : f32
    %cst_9 = arith.constant 0.000000e+00 : f32
    %7 = vector.broadcast %cst_8 : f32 to vector<2x1x8xf32>
    %8 = vector.broadcast %cst_9 : f32 to vector<2x1x8xf32>
    %9 = arith.select %6, %7, %8 : vector<2x1x8xi1>, vector<2x1x8xf32>
    %c0_10 = arith.constant 0 : index
    %c0_11 = arith.constant 0 : index
    %c0_12 = arith.constant 0 : index
    %10 = vector.load %arg3[%c0_10, %c0_11, %c0_12] : memref<2x1x8xf32, #tpu.memory_space<vmem>>, vector<2x1x8xf32>
    %cst_13 = arith.constant 5.000000e-01 : f32
    %11 = vector.broadcast %cst_13 : f32 to vector<2x1x8xf32>
    %12 = arith.cmpf ogt, %10, %11 : vector<2x1x8xf32>
    %cst_14 = arith.constant -1.000000e+30 : f32
    %cst_15 = arith.constant 0.000000e+00 : f32
    %13 = vector.broadcast %cst_14 : f32 to vector<2x1x8xf32>
    %14 = vector.broadcast %cst_15 : f32 to vector<2x1x8xf32>
    %15 = arith.select %12, %13, %14 : vector<2x1x8xi1>, vector<2x1x8xf32>
    %c0_16 = arith.constant 0 : index
    %c0_17 = arith.constant 0 : index
    %16 = vector.load %arg4[%c0_16, %c0_17] : memref<32x96xf32, #tpu.memory_space<vmem>>, vector<32x96xf32>
    %cst_18 = arith.constant dense<0.000000e+00> : vector<16x96xf32>
    %17 = tpu.matmul %1, %16, %cst_18 {dimension_numbers = #tpu.dot_dimension_numbers<[1], [0], [0], [1], [0, 0, 1, 1], [], []>} : vector<16x32xf32>, vector<32x96xf32>, vector<16x96xf32> -> vector<16x96xf32>
    %c0_19 = arith.constant 0 : index
    %c0_20 = arith.constant 0 : index
    %18 = vector.load %arg5[%c0_19, %c0_20] : memref<1x96xf32, #tpu.memory_space<vmem>>, vector<1x96xf32>
    %19 = vector.broadcast %18 : vector<1x96xf32> to vector<16x96xf32>
    %20 = arith.addf %17, %19 : vector<16x96xf32>
    %21 = vector.extract_strided_slice %20 {offsets = [0, 0], sizes = [16, 32], strides = [1, 1]} : vector<16x96xf32> to vector<16x32xf32>
    %22 = vector.shape_cast %21 : vector<16x32xf32> to vector<2x8x32xf32>
    %23 = vector.extract_strided_slice %20 {offsets = [0, 32], sizes = [16, 32], strides = [1, 1]} : vector<16x96xf32> to vector<16x32xf32>
    %24 = vector.shape_cast %23 : vector<16x32xf32> to vector<2x8x32xf32>
    %25 = vector.extract_strided_slice %20 {offsets = [0, 64], sizes = [16, 32], strides = [1, 1]} : vector<16x96xf32> to vector<16x32xf32>
    %26 = vector.shape_cast %25 : vector<16x32xf32> to vector<2x8x32xf32>
    %27 = vector.extract_strided_slice %22 {offsets = [0, 0, 0], sizes = [2, 8, 8], strides = [1, 1, 1]} : vector<2x8x32xf32> to vector<2x8x8xf32>
    %28 = vector.extract_strided_slice %24 {offsets = [0, 0, 0], sizes = [2, 8, 8], strides = [1, 1, 1]} : vector<2x8x32xf32> to vector<2x8x8xf32>
    "tpu.trace_start"() <{level = 10 : i32, message = "bqd,bkd->bqk"}> : () -> ()
    %cst_21 = arith.constant dense<0.000000e+00> : vector<2x8x8xf32>
    %29 = tpu.matmul %27, %28, %cst_21 {dimension_numbers = #tpu.dot_dimension_numbers<[2], [2], [1], [1], [0, 0, 0, 1, 1, 1], [0], [0]>} : vector<2x8x8xf32>, vector<2x8x8xf32>, vector<2x8x8xf32> -> vector<2x8x8xf32>
    "tpu.trace_stop"() : () -> ()
    %30 = vector.broadcast %9 : vector<2x1x8xf32> to vector<2x8x8xf32>
    %31 = arith.addf %29, %30 : vector<2x8x8xf32>
    %cst_22 = arith.constant dense<0xFF800000> : vector<2x8xf32>
    %32 = vector.multi_reduction <maximumf>, %31, %cst_22 [2] : vector<2x8x8xf32> to vector<2x8xf32>
    %33 = vector.shape_cast %32 : vector<2x8xf32> to vector<2x8x1xf32>
    %34 = vector.broadcast %33 : vector<2x8x1xf32> to vector<2x8x8xf32>
    %35 = arith.subf %31, %34 : vector<2x8x8xf32>
    %36 = math.exp %35 : vector<2x8x8xf32>
    %cst_23 = arith.constant dense<0.000000e+00> : vector<2x8xf32>
    %37 = vector.multi_reduction <add>, %36, %cst_23 [2] : vector<2x8x8xf32> to vector<2x8xf32>
    %38 = vector.shape_cast %37 : vector<2x8xf32> to vector<2x8x1xf32>
    %39 = tpu.reciprocal %38 {approx = true} : vector<2x8x1xf32> -> vector<2x8x1xf32>
    %40 = vector.broadcast %39 : vector<2x8x1xf32> to vector<2x8x8xf32>
    %41 = arith.mulf %36, %40 : vector<2x8x8xf32>
    %42 = vector.extract_strided_slice %26 {offsets = [0, 0, 0], sizes = [2, 8, 8], strides = [1, 1, 1]} : vector<2x8x32xf32> to vector<2x8x8xf32>
    "tpu.trace_start"() <{level = 10 : i32, message = "bqk,bkd->bqd"}> : () -> ()
    %cst_24 = arith.constant dense<0.000000e+00> : vector<2x8x8xf32>
    %43 = tpu.matmul %41, %42, %cst_24 {dimension_numbers = #tpu.dot_dimension_numbers<[2], [1], [1], [2], [0, 0, 0, 1, 1, 2], [0], [0]>} : vector<2x8x8xf32>, vector<2x8x8xf32>, vector<2x8x8xf32> -> vector<2x8x8xf32>
    "tpu.trace_stop"() : () -> ()
    %44 = vector.extract_strided_slice %22 {offsets = [0, 0, 8], sizes = [2, 8, 8], strides = [1, 1, 1]} : vector<2x8x32xf32> to vector<2x8x8xf32>
    %45 = vector.extract_strided_slice %24 {offsets = [0, 0, 8], sizes = [2, 8, 8], strides = [1, 1, 1]} : vector<2x8x32xf32> to vector<2x8x8xf32>
    "tpu.trace_start"() <{level = 10 : i32, message = "bqd,bkd->bqk"}> : () -> ()
    %cst_25 = arith.constant dense<0.000000e+00> : vector<2x8x8xf32>
    %46 = tpu.matmul %44, %45, %cst_25 {dimension_numbers = #tpu.dot_dimension_numbers<[2], [2], [1], [1], [0, 0, 0, 1, 1, 1], [0], [0]>} : vector<2x8x8xf32>, vector<2x8x8xf32>, vector<2x8x8xf32> -> vector<2x8x8xf32>
    "tpu.trace_stop"() : () -> ()
    %47 = vector.broadcast %9 : vector<2x1x8xf32> to vector<2x8x8xf32>
    %48 = arith.addf %46, %47 : vector<2x8x8xf32>
    %cst_26 = arith.constant dense<0xFF800000> : vector<2x8xf32>
    %49 = vector.multi_reduction <maximumf>, %48, %cst_26 [2] : vector<2x8x8xf32> to vector<2x8xf32>
    %50 = vector.shape_cast %49 : vector<2x8xf32> to vector<2x8x1xf32>
    %51 = vector.broadcast %50 : vector<2x8x1xf32> to vector<2x8x8xf32>
    %52 = arith.subf %48, %51 : vector<2x8x8xf32>
    %53 = math.exp %52 : vector<2x8x8xf32>
    %cst_27 = arith.constant dense<0.000000e+00> : vector<2x8xf32>
    %54 = vector.multi_reduction <add>, %53, %cst_27 [2] : vector<2x8x8xf32> to vector<2x8xf32>
    %55 = vector.shape_cast %54 : vector<2x8xf32> to vector<2x8x1xf32>
    %56 = tpu.reciprocal %55 {approx = true} : vector<2x8x1xf32> -> vector<2x8x1xf32>
    %57 = vector.broadcast %56 : vector<2x8x1xf32> to vector<2x8x8xf32>
    %58 = arith.mulf %53, %57 : vector<2x8x8xf32>
    %59 = vector.extract_strided_slice %26 {offsets = [0, 0, 8], sizes = [2, 8, 8], strides = [1, 1, 1]} : vector<2x8x32xf32> to vector<2x8x8xf32>
    "tpu.trace_start"() <{level = 10 : i32, message = "bqk,bkd->bqd"}> : () -> ()
    %cst_28 = arith.constant dense<0.000000e+00> : vector<2x8x8xf32>
    %60 = tpu.matmul %58, %59, %cst_28 {dimension_numbers = #tpu.dot_dimension_numbers<[2], [1], [1], [2], [0, 0, 0, 1, 1, 2], [0], [0]>} : vector<2x8x8xf32>, vector<2x8x8xf32>, vector<2x8x8xf32> -> vector<2x8x8xf32>
    "tpu.trace_stop"() : () -> ()
    %61 = vector.extract_strided_slice %22 {offsets = [0, 0, 16], sizes = [2, 8, 8], strides = [1, 1, 1]} : vector<2x8x32xf32> to vector<2x8x8xf32>
    %62 = vector.extract_strided_slice %24 {offsets = [0, 0, 16], sizes = [2, 8, 8], strides = [1, 1, 1]} : vector<2x8x32xf32> to vector<2x8x8xf32>
    "tpu.trace_start"() <{level = 10 : i32, message = "bqd,bkd->bqk"}> : () -> ()
    %cst_29 = arith.constant dense<0.000000e+00> : vector<2x8x8xf32>
    %63 = tpu.matmul %61, %62, %cst_29 {dimension_numbers = #tpu.dot_dimension_numbers<[2], [2], [1], [1], [0, 0, 0, 1, 1, 1], [0], [0]>} : vector<2x8x8xf32>, vector<2x8x8xf32>, vector<2x8x8xf32> -> vector<2x8x8xf32>
    "tpu.trace_stop"() : () -> ()
    %64 = vector.broadcast %9 : vector<2x1x8xf32> to vector<2x8x8xf32>
    %65 = arith.addf %63, %64 : vector<2x8x8xf32>
    %cst_30 = arith.constant dense<0xFF800000> : vector<2x8xf32>
    %66 = vector.multi_reduction <maximumf>, %65, %cst_30 [2] : vector<2x8x8xf32> to vector<2x8xf32>
    %67 = vector.shape_cast %66 : vector<2x8xf32> to vector<2x8x1xf32>
    %68 = vector.broadcast %67 : vector<2x8x1xf32> to vector<2x8x8xf32>
    %69 = arith.subf %65, %68 : vector<2x8x8xf32>
    %70 = math.exp %69 : vector<2x8x8xf32>
    %cst_31 = arith.constant dense<0.000000e+00> : vector<2x8xf32>
    %71 = vector.multi_reduction <add>, %70, %cst_31 [2] : vector<2x8x8xf32> to vector<2x8xf32>
    %72 = vector.shape_cast %71 : vector<2x8xf32> to vector<2x8x1xf32>
    %73 = tpu.reciprocal %72 {approx = true} : vector<2x8x1xf32> -> vector<2x8x1xf32>
    %74 = vector.broadcast %73 : vector<2x8x1xf32> to vector<2x8x8xf32>
    %75 = arith.mulf %70, %74 : vector<2x8x8xf32>
    %76 = vector.extract_strided_slice %26 {offsets = [0, 0, 16], sizes = [2, 8, 8], strides = [1, 1, 1]} : vector<2x8x32xf32> to vector<2x8x8xf32>
    "tpu.trace_start"() <{level = 10 : i32, message = "bqk,bkd->bqd"}> : () -> ()
    %cst_32 = arith.constant dense<0.000000e+00> : vector<2x8x8xf32>
    %77 = tpu.matmul %75, %76, %cst_32 {dimension_numbers = #tpu.dot_dimension_numbers<[2], [1], [1], [2], [0, 0, 0, 1, 1, 2], [0], [0]>} : vector<2x8x8xf32>, vector<2x8x8xf32>, vector<2x8x8xf32> -> vector<2x8x8xf32>
    "tpu.trace_stop"() : () -> ()
    %78 = vector.extract_strided_slice %22 {offsets = [0, 0, 24], sizes = [2, 8, 8], strides = [1, 1, 1]} : vector<2x8x32xf32> to vector<2x8x8xf32>
    %79 = vector.extract_strided_slice %24 {offsets = [0, 0, 24], sizes = [2, 8, 8], strides = [1, 1, 1]} : vector<2x8x32xf32> to vector<2x8x8xf32>
    "tpu.trace_start"() <{level = 10 : i32, message = "bqd,bkd->bqk"}> : () -> ()
    %cst_33 = arith.constant dense<0.000000e+00> : vector<2x8x8xf32>
    %80 = tpu.matmul %78, %79, %cst_33 {dimension_numbers = #tpu.dot_dimension_numbers<[2], [2], [1], [1], [0, 0, 0, 1, 1, 1], [0], [0]>} : vector<2x8x8xf32>, vector<2x8x8xf32>, vector<2x8x8xf32> -> vector<2x8x8xf32>
    "tpu.trace_stop"() : () -> ()
    %81 = vector.broadcast %9 : vector<2x1x8xf32> to vector<2x8x8xf32>
    %82 = arith.addf %80, %81 : vector<2x8x8xf32>
    %cst_34 = arith.constant dense<0xFF800000> : vector<2x8xf32>
    %83 = vector.multi_reduction <maximumf>, %82, %cst_34 [2] : vector<2x8x8xf32> to vector<2x8xf32>
    %84 = vector.shape_cast %83 : vector<2x8xf32> to vector<2x8x1xf32>
    %85 = vector.broadcast %84 : vector<2x8x1xf32> to vector<2x8x8xf32>
    %86 = arith.subf %82, %85 : vector<2x8x8xf32>
    %87 = math.exp %86 : vector<2x8x8xf32>
    %cst_35 = arith.constant dense<0.000000e+00> : vector<2x8xf32>
    %88 = vector.multi_reduction <add>, %87, %cst_35 [2] : vector<2x8x8xf32> to vector<2x8xf32>
    %89 = vector.shape_cast %88 : vector<2x8xf32> to vector<2x8x1xf32>
    %90 = tpu.reciprocal %89 {approx = true} : vector<2x8x1xf32> -> vector<2x8x1xf32>
    %91 = vector.broadcast %90 : vector<2x8x1xf32> to vector<2x8x8xf32>
    %92 = arith.mulf %87, %91 : vector<2x8x8xf32>
    %93 = vector.extract_strided_slice %26 {offsets = [0, 0, 24], sizes = [2, 8, 8], strides = [1, 1, 1]} : vector<2x8x32xf32> to vector<2x8x8xf32>
    "tpu.trace_start"() <{level = 10 : i32, message = "bqk,bkd->bqd"}> : () -> ()
    %cst_36 = arith.constant dense<0.000000e+00> : vector<2x8x8xf32>
    %94 = tpu.matmul %92, %93, %cst_36 {dimension_numbers = #tpu.dot_dimension_numbers<[2], [1], [1], [2], [0, 0, 0, 1, 1, 2], [0], [0]>} : vector<2x8x8xf32>, vector<2x8x8xf32>, vector<2x8x8xf32> -> vector<2x8x8xf32>
    "tpu.trace_stop"() : () -> ()
    %95 = tpu.concatenate %43, %60, %77, %94 in 2 : vector<2x8x8xf32>, vector<2x8x8xf32>, vector<2x8x8xf32>, vector<2x8x8xf32> -> vector<2x8x32xf32>
    %96 = vector.shape_cast %95 : vector<2x8x32xf32> to vector<16x32xf32>
    %c0_37 = arith.constant 0 : index
    %c0_38 = arith.constant 0 : index
    %97 = vector.load %arg6[%c0_37, %c0_38] : memref<32x32xf32, #tpu.memory_space<vmem>>, vector<32x32xf32>
    %cst_39 = arith.constant dense<0.000000e+00> : vector<16x32xf32>
    %98 = tpu.matmul %96, %97, %cst_39 {dimension_numbers = #tpu.dot_dimension_numbers<[1], [0], [0], [1], [0, 0, 1, 1], [], []>} : vector<16x32xf32>, vector<32x32xf32>, vector<16x32xf32> -> vector<16x32xf32>
    %c0_40 = arith.constant 0 : index
    %c0_41 = arith.constant 0 : index
    %99 = vector.load %arg7[%c0_40, %c0_41] : memref<1x32xf32, #tpu.memory_space<vmem>>, vector<1x32xf32>
    %100 = vector.broadcast %99 : vector<1x32xf32> to vector<16x32xf32>
    %101 = arith.addf %98, %100 : vector<16x32xf32>
    %102 = arith.addf %1, %101 : vector<16x32xf32>
    %c0_42 = arith.constant 0 : index
    %c0_43 = arith.constant 0 : index
    %103 = vector.load %arg14[%c0_42, %c0_43] : memref<1x32xf32, #tpu.memory_space<vmem>>, vector<1x32xf32>
    %c0_44 = arith.constant 0 : index
    %c0_45 = arith.constant 0 : index
    %104 = vector.load %arg15[%c0_44, %c0_45] : memref<1x32xf32, #tpu.memory_space<vmem>>, vector<1x32xf32>
    %cst_46 = arith.constant dense<0.000000e+00> : vector<16xf32>
    %105 = vector.multi_reduction <add>, %102, %cst_46 [1] : vector<16x32xf32> to vector<16xf32>
    %106 = vector.shape_cast %105 : vector<16xf32> to vector<16x1xf32>
    %cst_47 = arith.constant 3.200000e+01 : f32
    %107 = vector.broadcast %cst_47 : f32 to vector<16x1xf32>
    %108 = arith.divf %106, %107 : vector<16x1xf32>
    %109 = vector.broadcast %108 : vector<16x1xf32> to vector<16x32xf32>
    %110 = arith.subf %102, %109 : vector<16x32xf32>
    %111 = arith.mulf %110, %110 : vector<16x32xf32>
    %cst_48 = arith.constant dense<0.000000e+00> : vector<16xf32>
    %112 = vector.multi_reduction <add>, %111, %cst_48 [1] : vector<16x32xf32> to vector<16xf32>
    %113 = vector.shape_cast %112 : vector<16xf32> to vector<16x1xf32>
    %cst_49 = arith.constant 3.200000e+01 : f32
    %114 = vector.broadcast %cst_49 : f32 to vector<16x1xf32>
    %115 = arith.divf %113, %114 : vector<16x1xf32>
    %116 = vector.broadcast %108 : vector<16x1xf32> to vector<16x32xf32>
    %117 = arith.subf %102, %116 : vector<16x32xf32>
    %cst_50 = arith.constant 9.99999974E-6 : f32
    %118 = vector.broadcast %cst_50 : f32 to vector<16x1xf32>
    %119 = arith.addf %115, %118 : vector<16x1xf32>
    %120 = math.rsqrt %119 : vector<16x1xf32>
    %121 = vector.broadcast %120 : vector<16x1xf32> to vector<16x32xf32>
    %122 = arith.mulf %117, %121 : vector<16x32xf32>
    %123 = vector.broadcast %103 : vector<1x32xf32> to vector<16x32xf32>
    %124 = arith.mulf %122, %123 : vector<16x32xf32>
    %125 = vector.broadcast %104 : vector<1x32xf32> to vector<16x32xf32>
    %126 = arith.addf %124, %125 : vector<16x32xf32>
    %c0_51 = arith.constant 0 : index
    %c0_52 = arith.constant 0 : index
    %127 = vector.load %arg8[%c0_51, %c0_52] : memref<32x32xf32, #tpu.memory_space<vmem>>, vector<32x32xf32>
    %cst_53 = arith.constant dense<0.000000e+00> : vector<16x32xf32>
    %128 = tpu.matmul %126, %127, %cst_53 {dimension_numbers = #tpu.dot_dimension_numbers<[1], [0], [0], [1], [0, 0, 1, 1], [], []>} : vector<16x32xf32>, vector<32x32xf32>, vector<16x32xf32> -> vector<16x32xf32>
    %c0_54 = arith.constant 0 : index
    %c0_55 = arith.constant 0 : index
    %129 = vector.load %arg9[%c0_54, %c0_55] : memref<1x32xf32, #tpu.memory_space<vmem>>, vector<1x32xf32>
    %130 = vector.broadcast %129 : vector<1x32xf32> to vector<16x32xf32>
    %131 = arith.addf %128, %130 : vector<16x32xf32>
    %132 = vector.shape_cast %131 : vector<16x32xf32> to vector<2x8x32xf32>
    %c0_56 = arith.constant 0 : index
    %c0_57 = arith.constant 0 : index
    %133 = vector.load %arg10[%c0_56, %c0_57] : memref<32x64xf32, #tpu.memory_space<vmem>>, vector<32x64xf32>
    %cst_58 = arith.constant dense<0.000000e+00> : vector<16x64xf32>
    %134 = tpu.matmul %3, %133, %cst_58 {dimension_numbers = #tpu.dot_dimension_numbers<[1], [0], [0], [1], [0, 0, 1, 1], [], []>} : vector<16x32xf32>, vector<32x64xf32>, vector<16x64xf32> -> vector<16x64xf32>
    %c0_59 = arith.constant 0 : index
    %c0_60 = arith.constant 0 : index
    %135 = vector.load %arg11[%c0_59, %c0_60] : memref<1x64xf32, #tpu.memory_space<vmem>>, vector<1x64xf32>
    %136 = vector.broadcast %135 : vector<1x64xf32> to vector<16x64xf32>
    %137 = arith.addf %134, %136 : vector<16x64xf32>
    %138 = vector.extract_strided_slice %137 {offsets = [0, 0], sizes = [16, 32], strides = [1, 1]} : vector<16x64xf32> to vector<16x32xf32>
    %139 = vector.shape_cast %138 : vector<16x32xf32> to vector<2x8x32xf32>
    %140 = vector.extract_strided_slice %137 {offsets = [0, 32], sizes = [16, 32], strides = [1, 1]} : vector<16x64xf32> to vector<16x32xf32>
    %141 = vector.shape_cast %140 : vector<16x32xf32> to vector<2x8x32xf32>
    %142 = vector.extract_strided_slice %132 {offsets = [0, 0, 0], sizes = [2, 8, 8], strides = [1, 1, 1]} : vector<2x8x32xf32> to vector<2x8x8xf32>
    %143 = vector.extract_strided_slice %139 {offsets = [0, 0, 0], sizes = [2, 8, 8], strides = [1, 1, 1]} : vector<2x8x32xf32> to vector<2x8x8xf32>
    "tpu.trace_start"() <{level = 10 : i32, message = "bqd,bkd->bqk"}> : () -> ()
    %cst_61 = arith.constant dense<0.000000e+00> : vector<2x8x8xf32>
    %144 = tpu.matmul %142, %143, %cst_61 {dimension_numbers = #tpu.dot_dimension_numbers<[2], [2], [1], [1], [0, 0, 0, 1, 1, 1], [0], [0]>} : vector<2x8x8xf32>, vector<2x8x8xf32>, vector<2x8x8xf32> -> vector<2x8x8xf32>
    "tpu.trace_stop"() : () -> ()
    %145 = vector.broadcast %15 : vector<2x1x8xf32> to vector<2x8x8xf32>
    %146 = arith.addf %144, %145 : vector<2x8x8xf32>
    %cst_62 = arith.constant dense<0xFF800000> : vector<2x8xf32>
    %147 = vector.multi_reduction <maximumf>, %146, %cst_62 [2] : vector<2x8x8xf32> to vector<2x8xf32>
    %148 = vector.shape_cast %147 : vector<2x8xf32> to vector<2x8x1xf32>
    %149 = vector.broadcast %148 : vector<2x8x1xf32> to vector<2x8x8xf32>
    %150 = arith.subf %146, %149 : vector<2x8x8xf32>
    %151 = math.exp %150 : vector<2x8x8xf32>
    %cst_63 = arith.constant dense<0.000000e+00> : vector<2x8xf32>
    %152 = vector.multi_reduction <add>, %151, %cst_63 [2] : vector<2x8x8xf32> to vector<2x8xf32>
    %153 = vector.shape_cast %152 : vector<2x8xf32> to vector<2x8x1xf32>
    %154 = tpu.reciprocal %153 {approx = true} : vector<2x8x1xf32> -> vector<2x8x1xf32>
    %155 = vector.broadcast %154 : vector<2x8x1xf32> to vector<2x8x8xf32>
    %156 = arith.mulf %151, %155 : vector<2x8x8xf32>
    %157 = vector.extract_strided_slice %141 {offsets = [0, 0, 0], sizes = [2, 8, 8], strides = [1, 1, 1]} : vector<2x8x32xf32> to vector<2x8x8xf32>
    "tpu.trace_start"() <{level = 10 : i32, message = "bqk,bkd->bqd"}> : () -> ()
    %cst_64 = arith.constant dense<0.000000e+00> : vector<2x8x8xf32>
    %158 = tpu.matmul %156, %157, %cst_64 {dimension_numbers = #tpu.dot_dimension_numbers<[2], [1], [1], [2], [0, 0, 0, 1, 1, 2], [0], [0]>} : vector<2x8x8xf32>, vector<2x8x8xf32>, vector<2x8x8xf32> -> vector<2x8x8xf32>
    "tpu.trace_stop"() : () -> ()
    %159 = vector.extract_strided_slice %132 {offsets = [0, 0, 8], sizes = [2, 8, 8], strides = [1, 1, 1]} : vector<2x8x32xf32> to vector<2x8x8xf32>
    %160 = vector.extract_strided_slice %139 {offsets = [0, 0, 8], sizes = [2, 8, 8], strides = [1, 1, 1]} : vector<2x8x32xf32> to vector<2x8x8xf32>
    "tpu.trace_start"() <{level = 10 : i32, message = "bqd,bkd->bqk"}> : () -> ()
    %cst_65 = arith.constant dense<0.000000e+00> : vector<2x8x8xf32>
    %161 = tpu.matmul %159, %160, %cst_65 {dimension_numbers = #tpu.dot_dimension_numbers<[2], [2], [1], [1], [0, 0, 0, 1, 1, 1], [0], [0]>} : vector<2x8x8xf32>, vector<2x8x8xf32>, vector<2x8x8xf32> -> vector<2x8x8xf32>
    "tpu.trace_stop"() : () -> ()
    %162 = vector.broadcast %15 : vector<2x1x8xf32> to vector<2x8x8xf32>
    %163 = arith.addf %161, %162 : vector<2x8x8xf32>
    %cst_66 = arith.constant dense<0xFF800000> : vector<2x8xf32>
    %164 = vector.multi_reduction <maximumf>, %163, %cst_66 [2] : vector<2x8x8xf32> to vector<2x8xf32>
    %165 = vector.shape_cast %164 : vector<2x8xf32> to vector<2x8x1xf32>
    %166 = vector.broadcast %165 : vector<2x8x1xf32> to vector<2x8x8xf32>
    %167 = arith.subf %163, %166 : vector<2x8x8xf32>
    %168 = math.exp %167 : vector<2x8x8xf32>
    %cst_67 = arith.constant dense<0.000000e+00> : vector<2x8xf32>
    %169 = vector.multi_reduction <add>, %168, %cst_67 [2] : vector<2x8x8xf32> to vector<2x8xf32>
    %170 = vector.shape_cast %169 : vector<2x8xf32> to vector<2x8x1xf32>
    %171 = tpu.reciprocal %170 {approx = true} : vector<2x8x1xf32> -> vector<2x8x1xf32>
    %172 = vector.broadcast %171 : vector<2x8x1xf32> to vector<2x8x8xf32>
    %173 = arith.mulf %168, %172 : vector<2x8x8xf32>
    %174 = vector.extract_strided_slice %141 {offsets = [0, 0, 8], sizes = [2, 8, 8], strides = [1, 1, 1]} : vector<2x8x32xf32> to vector<2x8x8xf32>
    "tpu.trace_start"() <{level = 10 : i32, message = "bqk,bkd->bqd"}> : () -> ()
    %cst_68 = arith.constant dense<0.000000e+00> : vector<2x8x8xf32>
    %175 = tpu.matmul %173, %174, %cst_68 {dimension_numbers = #tpu.dot_dimension_numbers<[2], [1], [1], [2], [0, 0, 0, 1, 1, 2], [0], [0]>} : vector<2x8x8xf32>, vector<2x8x8xf32>, vector<2x8x8xf32> -> vector<2x8x8xf32>
    "tpu.trace_stop"() : () -> ()
    %176 = vector.extract_strided_slice %132 {offsets = [0, 0, 16], sizes = [2, 8, 8], strides = [1, 1, 1]} : vector<2x8x32xf32> to vector<2x8x8xf32>
    %177 = vector.extract_strided_slice %139 {offsets = [0, 0, 16], sizes = [2, 8, 8], strides = [1, 1, 1]} : vector<2x8x32xf32> to vector<2x8x8xf32>
    "tpu.trace_start"() <{level = 10 : i32, message = "bqd,bkd->bqk"}> : () -> ()
    %cst_69 = arith.constant dense<0.000000e+00> : vector<2x8x8xf32>
    %178 = tpu.matmul %176, %177, %cst_69 {dimension_numbers = #tpu.dot_dimension_numbers<[2], [2], [1], [1], [0, 0, 0, 1, 1, 1], [0], [0]>} : vector<2x8x8xf32>, vector<2x8x8xf32>, vector<2x8x8xf32> -> vector<2x8x8xf32>
    "tpu.trace_stop"() : () -> ()
    %179 = vector.broadcast %15 : vector<2x1x8xf32> to vector<2x8x8xf32>
    %180 = arith.addf %178, %179 : vector<2x8x8xf32>
    %cst_70 = arith.constant dense<0xFF800000> : vector<2x8xf32>
    %181 = vector.multi_reduction <maximumf>, %180, %cst_70 [2] : vector<2x8x8xf32> to vector<2x8xf32>
    %182 = vector.shape_cast %181 : vector<2x8xf32> to vector<2x8x1xf32>
    %183 = vector.broadcast %182 : vector<2x8x1xf32> to vector<2x8x8xf32>
    %184 = arith.subf %180, %183 : vector<2x8x8xf32>
    %185 = math.exp %184 : vector<2x8x8xf32>
    %cst_71 = arith.constant dense<0.000000e+00> : vector<2x8xf32>
    %186 = vector.multi_reduction <add>, %185, %cst_71 [2] : vector<2x8x8xf32> to vector<2x8xf32>
    %187 = vector.shape_cast %186 : vector<2x8xf32> to vector<2x8x1xf32>
    %188 = tpu.reciprocal %187 {approx = true} : vector<2x8x1xf32> -> vector<2x8x1xf32>
    %189 = vector.broadcast %188 : vector<2x8x1xf32> to vector<2x8x8xf32>
    %190 = arith.mulf %185, %189 : vector<2x8x8xf32>
    %191 = vector.extract_strided_slice %141 {offsets = [0, 0, 16], sizes = [2, 8, 8], strides = [1, 1, 1]} : vector<2x8x32xf32> to vector<2x8x8xf32>
    "tpu.trace_start"() <{level = 10 : i32, message = "bqk,bkd->bqd"}> : () -> ()
    %cst_72 = arith.constant dense<0.000000e+00> : vector<2x8x8xf32>
    %192 = tpu.matmul %190, %191, %cst_72 {dimension_numbers = #tpu.dot_dimension_numbers<[2], [1], [1], [2], [0, 0, 0, 1, 1, 2], [0], [0]>} : vector<2x8x8xf32>, vector<2x8x8xf32>, vector<2x8x8xf32> -> vector<2x8x8xf32>
    "tpu.trace_stop"() : () -> ()
    %193 = vector.extract_strided_slice %132 {offsets = [0, 0, 24], sizes = [2, 8, 8], strides = [1, 1, 1]} : vector<2x8x32xf32> to vector<2x8x8xf32>
    %194 = vector.extract_strided_slice %139 {offsets = [0, 0, 24], sizes = [2, 8, 8], strides = [1, 1, 1]} : vector<2x8x32xf32> to vector<2x8x8xf32>
    "tpu.trace_start"() <{level = 10 : i32, message = "bqd,bkd->bqk"}> : () -> ()
    %cst_73 = arith.constant dense<0.000000e+00> : vector<2x8x8xf32>
    %195 = tpu.matmul %193, %194, %cst_73 {dimension_numbers = #tpu.dot_dimension_numbers<[2], [2], [1], [1], [0, 0, 0, 1, 1, 1], [0], [0]>} : vector<2x8x8xf32>, vector<2x8x8xf32>, vector<2x8x8xf32> -> vector<2x8x8xf32>
    "tpu.trace_stop"() : () -> ()
    %196 = vector.broadcast %15 : vector<2x1x8xf32> to vector<2x8x8xf32>
    %197 = arith.addf %195, %196 : vector<2x8x8xf32>
    %cst_74 = arith.constant dense<0xFF800000> : vector<2x8xf32>
    %198 = vector.multi_reduction <maximumf>, %197, %cst_74 [2] : vector<2x8x8xf32> to vector<2x8xf32>
    %199 = vector.shape_cast %198 : vector<2x8xf32> to vector<2x8x1xf32>
    %200 = vector.broadcast %199 : vector<2x8x1xf32> to vector<2x8x8xf32>
    %201 = arith.subf %197, %200 : vector<2x8x8xf32>
    %202 = math.exp %201 : vector<2x8x8xf32>
    %cst_75 = arith.constant dense<0.000000e+00> : vector<2x8xf32>
    %203 = vector.multi_reduction <add>, %202, %cst_75 [2] : vector<2x8x8xf32> to vector<2x8xf32>
    %204 = vector.shape_cast %203 : vector<2x8xf32> to vector<2x8x1xf32>
    %205 = tpu.reciprocal %204 {approx = true} : vector<2x8x1xf32> -> vector<2x8x1xf32>
    %206 = vector.broadcast %205 : vector<2x8x1xf32> to vector<2x8x8xf32>
    %207 = arith.mulf %202, %206 : vector<2x8x8xf32>
    %208 = vector.extract_strided_slice %141 {offsets = [0, 0, 24], sizes = [2, 8, 8], strides = [1, 1, 1]} : vector<2x8x32xf32> to vector<2x8x8xf32>
    "tpu.trace_start"() <{level = 10 : i32, message = "bqk,bkd->bqd"}> : () -> ()
    %cst_76 = arith.constant dense<0.000000e+00> : vector<2x8x8xf32>
    %209 = tpu.matmul %207, %208, %cst_76 {dimension_numbers = #tpu.dot_dimension_numbers<[2], [1], [1], [2], [0, 0, 0, 1, 1, 2], [0], [0]>} : vector<2x8x8xf32>, vector<2x8x8xf32>, vector<2x8x8xf32> -> vector<2x8x8xf32>
    "tpu.trace_stop"() : () -> ()
    %210 = tpu.concatenate %158, %175, %192, %209 in 2 : vector<2x8x8xf32>, vector<2x8x8xf32>, vector<2x8x8xf32>, vector<2x8x8xf32> -> vector<2x8x32xf32>
    %211 = vector.shape_cast %210 : vector<2x8x32xf32> to vector<16x32xf32>
    %c0_77 = arith.constant 0 : index
    %c0_78 = arith.constant 0 : index
    %212 = vector.load %arg12[%c0_77, %c0_78] : memref<32x32xf32, #tpu.memory_space<vmem>>, vector<32x32xf32>
    %cst_79 = arith.constant dense<0.000000e+00> : vector<16x32xf32>
    %213 = tpu.matmul %211, %212, %cst_79 {dimension_numbers = #tpu.dot_dimension_numbers<[1], [0], [0], [1], [0, 0, 1, 1], [], []>} : vector<16x32xf32>, vector<32x32xf32>, vector<16x32xf32> -> vector<16x32xf32>
    %c0_80 = arith.constant 0 : index
    %c0_81 = arith.constant 0 : index
    %214 = vector.load %arg13[%c0_80, %c0_81] : memref<1x32xf32, #tpu.memory_space<vmem>>, vector<1x32xf32>
    %215 = vector.broadcast %214 : vector<1x32xf32> to vector<16x32xf32>
    %216 = arith.addf %213, %215 : vector<16x32xf32>
    %217 = arith.addf %126, %216 : vector<16x32xf32>
    %c0_82 = arith.constant 0 : index
    %c0_83 = arith.constant 0 : index
    %218 = vector.load %arg16[%c0_82, %c0_83] : memref<1x32xf32, #tpu.memory_space<vmem>>, vector<1x32xf32>
    %c0_84 = arith.constant 0 : index
    %c0_85 = arith.constant 0 : index
    %219 = vector.load %arg17[%c0_84, %c0_85] : memref<1x32xf32, #tpu.memory_space<vmem>>, vector<1x32xf32>
    %cst_86 = arith.constant dense<0.000000e+00> : vector<16xf32>
    %220 = vector.multi_reduction <add>, %217, %cst_86 [1] : vector<16x32xf32> to vector<16xf32>
    %221 = vector.shape_cast %220 : vector<16xf32> to vector<16x1xf32>
    %cst_87 = arith.constant 3.200000e+01 : f32
    %222 = vector.broadcast %cst_87 : f32 to vector<16x1xf32>
    %223 = arith.divf %221, %222 : vector<16x1xf32>
    %224 = vector.broadcast %223 : vector<16x1xf32> to vector<16x32xf32>
    %225 = arith.subf %217, %224 : vector<16x32xf32>
    %226 = arith.mulf %225, %225 : vector<16x32xf32>
    %cst_88 = arith.constant dense<0.000000e+00> : vector<16xf32>
    %227 = vector.multi_reduction <add>, %226, %cst_88 [1] : vector<16x32xf32> to vector<16xf32>
    %228 = vector.shape_cast %227 : vector<16xf32> to vector<16x1xf32>
    %cst_89 = arith.constant 3.200000e+01 : f32
    %229 = vector.broadcast %cst_89 : f32 to vector<16x1xf32>
    %230 = arith.divf %228, %229 : vector<16x1xf32>
    %231 = vector.broadcast %223 : vector<16x1xf32> to vector<16x32xf32>
    %232 = arith.subf %217, %231 : vector<16x32xf32>
    %cst_90 = arith.constant 9.99999974E-6 : f32
    %233 = vector.broadcast %cst_90 : f32 to vector<16x1xf32>
    %234 = arith.addf %230, %233 : vector<16x1xf32>
    %235 = math.rsqrt %234 : vector<16x1xf32>
    %236 = vector.broadcast %235 : vector<16x1xf32> to vector<16x32xf32>
    %237 = arith.mulf %232, %236 : vector<16x32xf32>
    %238 = vector.broadcast %218 : vector<1x32xf32> to vector<16x32xf32>
    %239 = arith.mulf %237, %238 : vector<16x32xf32>
    %240 = vector.broadcast %219 : vector<1x32xf32> to vector<16x32xf32>
    %241 = arith.addf %239, %240 : vector<16x32xf32>
    %c0_91 = arith.constant 0 : index
    %c0_92 = arith.constant 0 : index
    %242 = vector.load %arg20[%c0_91, %c0_92] : memref<32x64xf32, #tpu.memory_space<vmem>>, vector<32x64xf32>
    %cst_93 = arith.constant dense<0.000000e+00> : vector<16x64xf32>
    %243 = tpu.matmul %241, %242, %cst_93 {dimension_numbers = #tpu.dot_dimension_numbers<[1], [0], [0], [1], [0, 0, 1, 1], [], []>} : vector<16x32xf32>, vector<32x64xf32>, vector<16x64xf32> -> vector<16x64xf32>
    %c0_94 = arith.constant 0 : index
    %c0_95 = arith.constant 0 : index
    %244 = vector.load %arg21[%c0_94, %c0_95] : memref<1x64xf32, #tpu.memory_space<vmem>>, vector<1x64xf32>
    %245 = vector.broadcast %244 : vector<1x64xf32> to vector<16x64xf32>
    %246 = arith.addf %243, %245 : vector<16x64xf32>
    %cst_96 = arith.constant 0.000000e+00 : f32
    %247 = vector.broadcast %cst_96 : f32 to vector<16x64xf32>
    %248 = arith.maximumf %246, %247 : vector<16x64xf32>
    %c0_97 = arith.constant 0 : index
    %c0_98 = arith.constant 0 : index
    %249 = vector.load %arg22[%c0_97, %c0_98] : memref<64x32xf32, #tpu.memory_space<vmem>>, vector<64x32xf32>
    %cst_99 = arith.constant dense<0.000000e+00> : vector<16x32xf32>
    %250 = tpu.matmul %248, %249, %cst_99 {dimension_numbers = #tpu.dot_dimension_numbers<[1], [0], [0], [1], [0, 0, 1, 1], [], []>} : vector<16x64xf32>, vector<64x32xf32>, vector<16x32xf32> -> vector<16x32xf32>
    %c0_100 = arith.constant 0 : index
    %c0_101 = arith.constant 0 : index
    %251 = vector.load %arg23[%c0_100, %c0_101] : memref<1x32xf32, #tpu.memory_space<vmem>>, vector<1x32xf32>
    %252 = vector.broadcast %251 : vector<1x32xf32> to vector<16x32xf32>
    %253 = arith.addf %250, %252 : vector<16x32xf32>
    %254 = arith.addf %241, %253 : vector<16x32xf32>
    %c0_102 = arith.constant 0 : index
    %c0_103 = arith.constant 0 : index
    %255 = vector.load %arg18[%c0_102, %c0_103] : memref<1x32xf32, #tpu.memory_space<vmem>>, vector<1x32xf32>
    %c0_104 = arith.constant 0 : index
    %c0_105 = arith.constant 0 : index
    %256 = vector.load %arg19[%c0_104, %c0_105] : memref<1x32xf32, #tpu.memory_space<vmem>>, vector<1x32xf32>
    %cst_106 = arith.constant dense<0.000000e+00> : vector<16xf32>
    %257 = vector.multi_reduction <add>, %254, %cst_106 [1] : vector<16x32xf32> to vector<16xf32>
    %258 = vector.shape_cast %257 : vector<16xf32> to vector<16x1xf32>
    %cst_107 = arith.constant 3.200000e+01 : f32
    %259 = vector.broadcast %cst_107 : f32 to vector<16x1xf32>
    %260 = arith.divf %258, %259 : vector<16x1xf32>
    %261 = vector.broadcast %260 : vector<16x1xf32> to vector<16x32xf32>
    %262 = arith.subf %254, %261 : vector<16x32xf32>
    %263 = arith.mulf %262, %262 : vector<16x32xf32>
    %cst_108 = arith.constant dense<0.000000e+00> : vector<16xf32>
    %264 = vector.multi_reduction <add>, %263, %cst_108 [1] : vector<16x32xf32> to vector<16xf32>
    %265 = vector.shape_cast %264 : vector<16xf32> to vector<16x1xf32>
    %cst_109 = arith.constant 3.200000e+01 : f32
    %266 = vector.broadcast %cst_109 : f32 to vector<16x1xf32>
    %267 = arith.divf %265, %266 : vector<16x1xf32>
    %268 = vector.broadcast %260 : vector<16x1xf32> to vector<16x32xf32>
    %269 = arith.subf %254, %268 : vector<16x32xf32>
    %cst_110 = arith.constant 9.99999974E-6 : f32
    %270 = vector.broadcast %cst_110 : f32 to vector<16x1xf32>
    %271 = arith.addf %267, %270 : vector<16x1xf32>
    %272 = math.rsqrt %271 : vector<16x1xf32>
    %273 = vector.broadcast %272 : vector<16x1xf32> to vector<16x32xf32>
    %274 = arith.mulf %269, %273 : vector<16x32xf32>
    %275 = vector.broadcast %255 : vector<1x32xf32> to vector<16x32xf32>
    %276 = arith.mulf %274, %275 : vector<16x32xf32>
    %277 = vector.broadcast %256 : vector<1x32xf32> to vector<16x32xf32>
    %278 = arith.addf %276, %277 : vector<16x32xf32>
    %279 = vector.shape_cast %278 : vector<16x32xf32> to vector<2x8x32xf32>
    %c0_111 = arith.constant 0 : index
    %c0_112 = arith.constant 0 : index
    %c0_113 = arith.constant 0 : index
    %280 = vector.load %arg24[%c0_111, %c0_112, %c0_113] : memref<2x8x32xf32, #tpu.memory_space<vmem>>, vector<2x8x32xf32>
    tpu.vector_store %arg24[%c0_111, %c0_112, %c0_113], %279 {strides = array<i32>} : memref<2x8x32xf32, #tpu.memory_space<vmem>>, vector<2x8x32xf32>,
    return
  }
}

</mosaic_0001>

<llo_original>
// kernel: decoder_layer.1
$region0: #{decoder_layer.1}
  #allocation0 [shape = 'u32[]', space=smem, size = 0x4, offset = 0x4, fixed_abs, tag = 'smem constant byte address 0x4 - core index']
  #allocation1 [shape = 'u32[72,128]{1,0:T(1,128)}', space=vmem, size = 0x9000, scoped, tag = 'internal scratch']
  %s0 = inlined_call_operand.vmem [shape: f32[2,8,32], index: 0, kind: input, shape index: {}]
  %s1 = inlined_call_operand.vmem [shape: f32[2,8,32], index: 1, kind: input, shape index: {}]
  %s2 = inlined_call_operand.vmem [shape: f32[2,1,8], index: 2, kind: input, shape index: {}]
  %s3 = inlined_call_operand.vmem [shape: f32[2,1,8], index: 3, kind: input, shape index: {}]
  %s4 = inlined_call_operand.vmem [shape: f32[32,96], index: 4, kind: input, shape index: {}]
  %s5 = inlined_call_operand.vmem [shape: f32[1,96], index: 5, kind: input, shape index: {}]
  %s6 = inlined_call_operand.vmem [shape: f32[32,32], index: 6, kind: input, shape index: {}]
  %s7 = inlined_call_operand.vmem [shape: f32[1,32], index: 7, kind: input, shape index: {}]
  %s8 = inlined_call_operand.vmem [shape: f32[32,32], index: 8, kind: input, shape index: {}]
  %s9 = inlined_call_operand.vmem [shape: f32[1,32], index: 9, kind: input, shape index: {}]
  %s10 = inlined_call_operand.vmem [shape: f32[32,64], index: 10, kind: input, shape index: {}]
  %s11 = inlined_call_operand.vmem [shape: f32[1,64], index: 11, kind: input, shape index: {}]
  %s12 = inlined_call_operand.vmem [shape: f32[32,32], index: 12, kind: input, shape index: {}]
  %s13 = inlined_call_operand.vmem [shape: f32[1,32], index: 13, kind: input, shape index: {}]
  %s14 = inlined_call_operand.vmem [shape: f32[1,32], index: 14, kind: input, shape index: {}]
  %s15 = inlined_call_operand.vmem [shape: f32[1,32], index: 15, kind: input, shape index: {}]
  %s16 = inlined_call_operand.vmem [shape: f32[1,32], index: 16, kind: input, shape index: {}]
  %s17 = inlined_call_operand.vmem [shape: f32[1,32], index: 17, kind: input, shape index: {}]
  %s18 = inlined_call_operand.vmem [shape: f32[1,32], index: 18, kind: input, shape index: {}]
  %s19 = inlined_call_operand.vmem [shape: f32[1,32], index: 19, kind: input, shape index: {}]
  %s20 = inlined_call_operand.vmem [shape: f32[32,64], index: 20, kind: input, shape index: {}]
  %s21 = inlined_call_operand.vmem [shape: f32[1,64], index: 21, kind: input, shape index: {}]
  %s22 = inlined_call_operand.vmem [shape: f32[64,32], index: 22, kind: input, shape index: {}]
  %s23 = inlined_call_operand.vmem [shape: f32[1,32], index: 23, kind: input, shape index: {}]
  %s24 = inlined_call_operand.hbm [shape: f32[2,8,32], index: 24, kind: output, shape index: {}]
  %s25 = sld [smem:[#allocation0]]
  $region106: #{decoder_layer.1} parent=0
    _
  %s27 = ssub.s32 1, %s25
  %s28 = scalar_select 0, %s27, %s25
  $region1: #{decoder_layer.1} parent=0
    #allocation2 [shape = 'u8[8192]{0}', space=vmem, size = 0x2000, scoped, tag = 'output window, operand 0, single buffered']
    #allocation3 [shape = 's32[1]{0}', space=sflag, size = 0x4, scoped, tag = 'scoped memory for decoder_layer.1']
    %29 = vsyncpa [#allocation3], 0
    // Predicated region
    $region2: #{decoder_layer.1} parent=1 // pred_check
      _
    $region3: #{decoder_layer.1} parent=1 // pred_check_branch
      %31 = sbr.rel (0) target = $region5
    $region4: #{decoder_layer.1} parent=1 // pred_region
      _
    $region5: #{decoder_layer.1} parent=1 // pred_fallthru
      _
    // Predicated region
    $region6: #{decoder_layer.1} parent=1 // pred_check
      _
    $region7: #{decoder_layer.1} parent=1 // pred_check_branch
      %33 = sbr.rel (0) target = $region9
    $region8: #{decoder_layer.1} parent=1 // pred_region
      _
    $region9: #{decoder_layer.1} parent=1 // pred_fallthru
      _
    // Predicated region
    $region10: #{decoder_layer.1} parent=1 // pred_check
      _
    $region11: #{decoder_layer.1} parent=1 // pred_check_branch
      %35 = sbr.rel (0) target = $region13
    $region12: #{decoder_layer.1} parent=1 // pred_region
      _
    $region13: #{decoder_layer.1} parent=1 // pred_fallthru
      _
    // Predicated region
    $region14: #{decoder_layer.1} parent=1 // pred_check
      _
    $region15: #{decoder_layer.1} parent=1 // pred_check_branch
      %37 = sbr.rel (0) target = $region17
    $region16: #{decoder_layer.1} parent=1 // pred_region
      _
    $region17: #{decoder_layer.1} parent=1 // pred_fallthru
      _
    // Predicated region
    $region18: #{decoder_layer.1} parent=1 // pred_check
      _
    $region19: #{decoder_layer.1} parent=1 // pred_check_branch
      %39 = sbr.rel (0) target = $region21
    $region20: #{decoder_layer.1} parent=1 // pred_region
      _
    $region21: #{decoder_layer.1} parent=1 // pred_fallthru
      _
    // Predicated region
    $region22: #{decoder_layer.1} parent=1 // pred_check
      _
    $region23: #{decoder_layer.1} parent=1 // pred_check_branch
      %41 = sbr.rel (0) target = $region25
    $region24: #{decoder_layer.1} parent=1 // pred_region
      _
    $region25: #{decoder_layer.1} parent=1 // pred_fallthru
      _
    // Predicated region
    $region26: #{decoder_layer.1} parent=1 // pred_check
      _
    $region27: #{decoder_layer.1} parent=1 // pred_check_branch
      %43 = sbr.rel (0) target = $region29
    $region28: #{decoder_layer.1} parent=1 // pred_region
      _
    $region29: #{decoder_layer.1} parent=1 // pred_fallthru
      _
    // Predicated region
    $region30: #{decoder_layer.1} parent=1 // pred_check
      _
    $region31: #{decoder_layer.1} parent=1 // pred_check_branch
      %45 = sbr.rel (0) target = $region33
    $region32: #{decoder_layer.1} parent=1 // pred_region
      _
    $region33: #{decoder_layer.1} parent=1 // pred_fallthru
      _
    // Predicated region
    $region34: #{decoder_layer.1} parent=1 // pred_check
      _
    $region35: #{decoder_layer.1} parent=1 // pred_check_branch
      %47 = sbr.rel (0) target = $region37
    $region36: #{decoder_layer.1} parent=1 // pred_region
      _
    $region37: #{decoder_layer.1} parent=1 // pred_fallthru
      _
    // Predicated region
    $region38: #{decoder_layer.1} parent=1 // pred_check
      _
    $region39: #{decoder_layer.1} parent=1 // pred_check_branch
      %49 = sbr.rel (0) target = $region41
    $region40: #{decoder_layer.1} parent=1 // pred_region
      _
    $region41: #{decoder_layer.1} parent=1 // pred_fallthru
      _
    // Predicated region
    $region42: #{decoder_layer.1} parent=1 // pred_check
      _
    $region43: #{decoder_layer.1} parent=1 // pred_check_branch
      %51 = sbr.rel (0) target = $region45
    $region44: #{decoder_layer.1} parent=1 // pred_region
      _
    $region45: #{decoder_layer.1} parent=1 // pred_fallthru
      _
    // Predicated region
    $region46: #{decoder_layer.1} parent=1 // pred_check
      _
    $region47: #{decoder_layer.1} parent=1 // pred_check_branch
      %53 = sbr.rel (0) target = $region49
    $region48: #{decoder_layer.1} parent=1 // pred_region
      _
    $region49: #{decoder_layer.1} parent=1 // pred_fallthru
      _
    // Predicated region
    $region50: #{decoder_layer.1} parent=1 // pred_check
      _
    $region51: #{decoder_layer.1} parent=1 // pred_check_branch
      %55 = sbr.rel (0) target = $region53
    $region52: #{decoder_layer.1} parent=1 // pred_region
      _
    $region53: #{decoder_layer.1} parent=1 // pred_fallthru
      _
    // Predicated region
    $region54: #{decoder_layer.1} parent=1 // pred_check
      _
    $region55: #{decoder_layer.1} parent=1 // pred_check_branch
      %57 = sbr.rel (0) target = $region57
    $region56: #{decoder_layer.1} parent=1 // pred_region
      _
    $region57: #{decoder_layer.1} parent=1 // pred_fallthru
      _
    // Predicated region
    $region58: #{decoder_layer.1} parent=1 // pred_check
      _
    $region59: #{decoder_layer.1} parent=1 // pred_check_branch
      %59 = sbr.rel (0) target = $region61
    $region60: #{decoder_layer.1} parent=1 // pred_region
      _
    $region61: #{decoder_layer.1} parent=1 // pred_fallthru
      _
    // Predicated region
    $region62: #{decoder_layer.1} parent=1 // pred_check
      _
    $region63: #{decoder_layer.1} parent=1 // pred_check_branch
      %61 = sbr.rel (0) target = $region65
    $region64: #{decoder_layer.1} parent=1 // pred_region
      _
    $region65: #{decoder_layer.1} parent=1 // pred_fallthru
      _
    // Predicated region
    $region66: #{decoder_layer.1} parent=1 // pred_check
      _
    $region67: #{decoder_layer.1} parent=1 // pred_check_branch
      %63 = sbr.rel (0) target = $region69
    $region68: #{decoder_layer.1} parent=1 // pred_region
      _
    $region69: #{decoder_layer.1} parent=1 // pred_fallthru
      _
    // Predicated region
    $region70: #{decoder_layer.1} parent=1 // pred_check
      _
    $region71: #{decoder_layer.1} parent=1 // pred_check_branch
      %65 = sbr.rel (0) target = $region73
    $region72: #{decoder_layer.1} parent=1 // pred_region
      _
    $region73: #{decoder_layer.1} parent=1 // pred_fallthru
      _
    // Predicated region
    $region74: #{decoder_layer.1} parent=1 // pred_check
      _
    $region75: #{decoder_layer.1} parent=1 // pred_check_branch
      %67 = sbr.rel (0) target = $region77
    $region76: #{decoder_layer.1} parent=1 // pred_region
      _
    $region77: #{decoder_layer.1} parent=1 // pred_fallthru
      _
    // Predicated region
    $region78: #{decoder_layer.1} parent=1 // pred_check
      _
    $region79: #{decoder_layer.1} parent=1 // pred_check_branch
      %69 = sbr.rel (0) target = $region81
    $region80: #{decoder_layer.1} parent=1 // pred_region
      _
    $region81: #{decoder_layer.1} parent=1 // pred_fallthru
      _
    // Predicated region
    $region82: #{decoder_layer.1} parent=1 // pred_check
      _
    $region83: #{decoder_layer.1} parent=1 // pred_check_branch
      %71 = sbr.rel (0) target = $region85
    $region84: #{decoder_layer.1} parent=1 // pred_region
      _
    $region85: #{decoder_layer.1} parent=1 // pred_fallthru
      _
    // Predicated region
    $region86: #{decoder_layer.1} parent=1 // pred_check
      _
    $region87: #{decoder_layer.1} parent=1 // pred_check_branch
      %73 = sbr.rel (0) target = $region89
    $region88: #{decoder_layer.1} parent=1 // pred_region
      _
    $region89: #{decoder_layer.1} parent=1 // pred_fallthru
      _
    // Predicated region
    $region90: #{decoder_layer.1} parent=1 // pred_check
      _
    $region91: #{decoder_layer.1} parent=1 // pred_check_branch
      %75 = sbr.rel (0) target = $region93
    $region92: #{decoder_layer.1} parent=1 // pred_region
      _
    $region93: #{decoder_layer.1} parent=1 // pred_fallthru
      _
    // Predicated region
    $region94: #{decoder_layer.1} parent=1 // pred_check
      _
    $region95: #{decoder_layer.1} parent=1 // pred_check_branch
      %77 = sbr.rel (0) target = $region97
    $region96: #{decoder_layer.1} parent=1 // pred_region
      _
    $region97: #{decoder_layer.1} parent=1 // pred_fallthru
      _
    %v78 = vld [vmem:[%s0] sm:$0xff]
    %v79 = vld [vmem:[%s0 + $0x8] sm:$0xff]
    %v80 = vld [vmem:[%s1] sm:$0xff]
    %v81 = vld [vmem:[%s1 + $0x8] sm:$0xff]
    %v82 = vld [vmem:[%s2] sm:$0x1]
    %v83 = vld [vmem:[%s2 + $0x1] sm:$0x1]
    %vm84 = vcmp.gt.f32.partialorder %v82, 0.5
    %vm85 = vcmp.gt.f32.partialorder %v83, 0.5
    %v86 = vsel %vm84, -1e+30, 0.0
    %v87 = vsel %vm85, -1e+30, 0.0
    %v88 = vld [vmem:[%s3] sm:$0x1]
    %v89 = vld [vmem:[%s3 + $0x1] sm:$0x1]
    %vm90 = vcmp.gt.f32.partialorder %v88, 0.5
    %vm91 = vcmp.gt.f32.partialorder %v89, 0.5
    %v92 = vsel %vm90, -1e+30, 0.0
    %v93 = vsel %vm91, -1e+30, 0.0
    %v94 = vld [vmem:[%s4] sm:$0xff]
    %v95 = vld [vmem:[%s4 + $0x8] sm:$0xff]
    %v96 = vld [vmem:[%s4 + $0x10] sm:$0xff]
    %v97 = vld [vmem:[%s4 + $0x18] sm:$0xff]
    %v98 = vld [vmem:[%s5] sm:$0x1]
    %v100 = vperm.slane %v98, 0
    %vm102 = vcmask 261120
    %v104 = vsel %vm102, %v78, 0
    %v107 = vsel %vm102, %v79, 0
    %109 = vmatpush.msra.mxu0 0.0
    %110 = vmatpush.msra.mxu0 0.0
    %111 = vmatpush.msra.mxu0 0.0
    %112 = vmatpush.msra.mxu0 0.0
    %113 = vmatpush.msra.mxu0 0.0
    %114 = vmatpush.msra.mxu0 0.0
    %115 = vmatpush.msra.mxu0 0.0
    %116 = vmatpush.msra.mxu0 0.0
    %117 = vmatpush.msra.mxu0 0.0
    %118 = vmatpush.msra.mxu0 0.0
    %119 = vmatpush.msra.mxu0 0.0
    %120 = vmatpush.msra.mxu0 0.0
    %121 = vmatpush.msra.mxu0 %v97
    %122 = vmatpush.msra.mxu0 %v96
    %123 = vmatpush.msra.mxu0 %v95
    %124 = vmatpush.msra.mxu0 %v94
    %125 = vmatmul.f32.gmra.mxu0 %v104
    %v126 = vpop.f32.mrf.mxu0
    %v127 = vadd.f32 %v100, %v126
    %128 = vmatmul.f32.gmra.mxu0 %v107
    %v129 = vpop.f32.mrf.mxu0
    %v130 = vadd.f32 %v100, %v129
    %131 = vdwg.mxu0
    %v134 = vperm.slane %v86, 0
    %v135 = vperm.slane %v87, 0
    %139 = vrot.lane.b32.xlu0 %v127, 96
    %v140 = vpop.permute.xlu0 %139
    %vm141 = vcmask 64512
    %v142 = vsel %vm141, %v127, 0
    %v144 = vsel %vm141, %v140, 0
    %146 = vmatpush.xpose.msra.mxu0 0.0
    %147 = vmatpush.xpose.msra.mxu0 0.0
    %148 = vmatpush.xpose.msra.mxu0 0.0
    %149 = vmatpush.xpose.msra.mxu0 0.0
    %150 = vmatpush.xpose.msra.mxu0 0.0
    %151 = vmatpush.xpose.msra.mxu0 0.0
    %152 = vmatpush.xpose.msra.mxu0 0.0
    %153 = vmatpush.xpose.msra.mxu0 0.0
    %154 = vmatpush.xpose.msra.mxu0 0.0
    %155 = vmatpush.xpose.msra.mxu0 0.0
    %156 = vmatpush.xpose.msra.mxu0 0.0
    %157 = vmatpush.xpose.msra.mxu0 0.0
    %158 = vmatpush.xpose.msra.mxu0 0.0
    %159 = vmatpush.xpose.msra.mxu0 0.0
    %160 = vmatpush.xpose.msra.mxu0 0.0
    %161 = vmatpush.xpose.msra.mxu0 %v144
    %162 = vmatmul.f32.gmra.mxu0 %v142
    %v163 = vpop.f32.mrf.mxu0
    %v164 = vadd.f32 %v134, %v163
    %165 = vdwg.mxu0
    %167 = vrot.lane.b32.xlu0 %v130, 96
    %v168 = vpop.permute.xlu0 %167
    %v169 = vsel %vm141, %v130, 0
    %v171 = vsel %vm141, %v168, 0
    %173 = vmatpush.xpose.msra.mxu0 0.0
    %174 = vmatpush.xpose.msra.mxu0 0.0
    %175 = vmatpush.xpose.msra.mxu0 0.0
    %176 = vmatpush.xpose.msra.mxu0 0.0
    %177 = vmatpush.xpose.msra.mxu0 0.0
    %178 = vmatpush.xpose.msra.mxu0 0.0
    %179 = vmatpush.xpose.msra.mxu0 0.0
    %180 = vmatpush.xpose.msra.mxu0 0.0
    %181 = vmatpush.xpose.msra.mxu0 0.0
    %182 = vmatpush.xpose.msra.mxu0 0.0
    %183 = vmatpush.xpose.msra.mxu0 0.0
    %184 = vmatpush.xpose.msra.mxu0 0.0
    %185 = vmatpush.xpose.msra.mxu0 0.0
    %186 = vmatpush.xpose.msra.mxu0 0.0
    %187 = vmatpush.xpose.msra.mxu0 0.0
    %188 = vmatpush.xpose.msra.mxu0 %v171
    %189 = vmatmul.f32.gmra.mxu0 %v169
    %v190 = vpop.f32.mrf.mxu0
    %v191 = vadd.f32 %v135, %v190
    %192 = vdwg.mxu0
    %v193 = vsel %vm141, %v164, -inf
    %194 = vmax.xlane.f32.xlu0 %v193
    %v195 = vpop.xlane.xlu0 %194
    %v196 = vsel %vm141, %v191, -inf
    %197 = vmax.xlane.f32.xlu0 %v196
    %v198 = vpop.xlane.xlu0 %197
    %v199 = vsub.f32 %v164, %v195
    %v200 = vsub.f32 %v191, %v198
    %v201 = vmul.f32 %v199, 1.442695
    %v202 = vpow.pop %v201
    %v203 = vmul.f32 %v200, 1.442695
    %v204 = vpow.pop %v203
    %v205 = vsel %vm141, %v202, 0.0
    %206 = vadd.xlane.f32.xlu0 %v205
    %v207 = vpop.xlane.xlu0 %206
    %v208 = vsel %vm141, %v204, 0.0
    %209 = vadd.xlane.f32.xlu0 %v208
    %v210 = vpop.xlane.xlu0 %209
    %v211 = vrcp.pop %v207
    %v212 = vrcp.pop %v210
    %v213 = vmul.f32 %v202, %v211
    %v214 = vmul.f32 %v204, %v212
    %215 = vrot.lane.b32.xlu0 %v127, 64
    %v216 = vpop.permute.xlu0 %215
    %v219 = vsel %vm141, %v213, 0
    %221 = vmatpush.msra.mxu0 0.0
    %222 = vmatpush.msra.mxu0 0.0
    %223 = vmatpush.msra.mxu0 0.0
    %224 = vmatpush.msra.mxu0 0.0
    %225 = vmatpush.msra.mxu0 0.0
    %226 = vmatpush.msra.mxu0 0.0
    %227 = vmatpush.msra.mxu0 0.0
    %228 = vmatpush.msra.mxu0 0.0
    %229 = vmatpush.msra.mxu0 0.0
    %230 = vmatpush.msra.mxu0 0.0
    %231 = vmatpush.msra.mxu0 0.0
    %232 = vmatpush.msra.mxu0 0.0
    %233 = vmatpush.msra.mxu0 0.0
    %234 = vmatpush.msra.mxu0 0.0
    %235 = vmatpush.msra.mxu0 0.0
    %236 = vmatpush.msra.mxu0 %v216
    %237 = vmatmul.f32.gmra.mxu0 %v219
    %v238 = vpop.f32.mrf.mxu0
    %v239 = vadd.f32 0.0, %v238
    %240 = vdwg.mxu0
    %241 = vrot.lane.b32.xlu0 %v130, 64
    %v242 = vpop.permute.xlu0 %241
    %v245 = vsel %vm141, %v214, 0
    %247 = vmatpush.msra.mxu0 0.0
    %248 = vmatpush.msra.mxu0 0.0
    %249 = vmatpush.msra.mxu0 0.0
    %250 = vmatpush.msra.mxu0 0.0
    %251 = vmatpush.msra.mxu0 0.0
    %252 = vmatpush.msra.mxu0 0.0
    %253 = vmatpush.msra.mxu0 0.0
    %254 = vmatpush.msra.mxu0 0.0
    %255 = vmatpush.msra.mxu0 0.0
    %256 = vmatpush.msra.mxu0 0.0
    %257 = vmatpush.msra.mxu0 0.0
    %258 = vmatpush.msra.mxu0 0.0
    %259 = vmatpush.msra.mxu0 0.0
    %260 = vmatpush.msra.mxu0 0.0
    %261 = vmatpush.msra.mxu0 0.0
    %262 = vmatpush.msra.mxu0 %v242
    %263 = vmatmul.f32.gmra.mxu0 %v245
    %v264 = vpop.f32.mrf.mxu0
    %v265 = vadd.f32 0.0, %v264
    %266 = vdwg.mxu0
    %267 = vrot.lane.b32.xlu0 %v127, 120
    %v268 = vpop.permute.xlu0 %267
    %269 = vrot.lane.b32.xlu0 %v127, 88
    %v270 = vpop.permute.xlu0 %269
    %v271 = vsel %vm141, %v268, 0
    %v273 = vsel %vm141, %v270, 0
    %275 = vmatpush.xpose.msra.mxu0 0.0
    %276 = vmatpush.xpose.msra.mxu0 0.0
    %277 = vmatpush.xpose.msra.mxu0 0.0
    %278 = vmatpush.xpose.msra.mxu0 0.0
    %279 = vmatpush.xpose.msra.mxu0 0.0
    %280 = vmatpush.xpose.msra.mxu0 0.0
    %281 = vmatpush.xpose.msra.mxu0 0.0
    %282 = vmatpush.xpose.msra.mxu0 0.0
    %283 = vmatpush.xpose.msra.mxu0 0.0
    %284 = vmatpush.xpose.msra.mxu0 0.0
    %285 = vmatpush.xpose.msra.mxu0 0.0
    %286 = vmatpush.xpose.msra.mxu0 0.0
    %287 = vmatpush.xpose.msra.mxu0 0.0
    %288 = vmatpush.xpose.msra.mxu0 0.0
    %289 = vmatpush.xpose.msra.mxu0 0.0
    %290 = vmatpush.xpose.msra.mxu0 %v273
    %291 = vmatmul.f32.gmra.mxu0 %v271
    %v292 = vpop.f32.mrf.mxu0
    %v293 = vadd.f32 %v134, %v292
    %294 = vdwg.mxu0
    %295 = vrot.lane.b32.xlu0 %v130, 120
    %v296 = vpop.permute.xlu0 %295
    %297 = vrot.lane.b32.xlu0 %v130, 88
    %v298 = vpop.permute.xlu0 %297
    %v299 = vsel %vm141, %v296, 0
    %v301 = vsel %vm141, %v298, 0
    %303 = vmatpush.xpose.msra.mxu0 0.0
    %304 = vmatpush.xpose.msra.mxu0 0.0
    %305 = vmatpush.xpose.msra.mxu0 0.0
    %306 = vmatpush.xpose.msra.mxu0 0.0
    %307 = vmatpush.xpose.msra.mxu0 0.0
    %308 = vmatpush.xpose.msra.mxu0 0.0
    %309 = vmatpush.xpose.msra.mxu0 0.0
    %310 = vmatpush.xpose.msra.mxu0 0.0
    %311 = vmatpush.xpose.msra.mxu0 0.0
    %312 = vmatpush.xpose.msra.mxu0 0.0
    %313 = vmatpush.xpose.msra.mxu0 0.0
    %314 = vmatpush.xpose.msra.mxu0 0.0
    %315 = vmatpush.xpose.msra.mxu0 0.0
    %316 = vmatpush.xpose.msra.mxu0 0.0
    %317 = vmatpush.xpose.msra.mxu0 0.0
    %318 = vmatpush.xpose.msra.mxu0 %v301
    %319 = vmatmul.f32.gmra.mxu0 %v299
    %v320 = vpop.f32.mrf.mxu0
    %v321 = vadd.f32 %v135, %v320
    %322 = vdwg.mxu0
    %v323 = vsel %vm141, %v293, -inf
    %324 = vmax.xlane.f32.xlu0 %v323
    %v325 = vpop.xlane.xlu0 %324
    %v326 = vsel %vm141, %v321, -inf
    %327 = vmax.xlane.f32.xlu0 %v326
    %v328 = vpop.xlane.xlu0 %327
    %v329 = vsub.f32 %v293, %v325
    %v330 = vsub.f32 %v321, %v328
    %v331 = vmul.f32 %v329, 1.442695
    %v332 = vpow.pop %v331
    %v333 = vmul.f32 %v330, 1.442695
    %v334 = vpow.pop %v333
    %v335 = vsel %vm141, %v332, 0.0
    %336 = vadd.xlane.f32.xlu0 %v335
    %v337 = vpop.xlane.xlu0 %336
    %v338 = vsel %vm141, %v334, 0.0
    %339 = vadd.xlane.f32.xlu0 %v338
    %v340 = vpop.xlane.xlu0 %339
    %v341 = vrcp.pop %v337
    %v342 = vrcp.pop %v340
    %v343 = vmul.f32 %v332, %v341
    %v344 = vmul.f32 %v334, %v342
    %345 = vrot.lane.b32.xlu0 %v127, 56
    %v346 = vpop.permute.xlu0 %345
    %v349 = vsel %vm141, %v343, 0
    %351 = vmatpush.msra.mxu0 0.0
    %352 = vmatpush.msra.mxu0 0.0
    %353 = vmatpush.msra.mxu0 0.0
    %354 = vmatpush.msra.mxu0 0.0
    %355 = vmatpush.msra.mxu0 0.0
    %356 = vmatpush.msra.mxu0 0.0
    %357 = vmatpush.msra.mxu0 0.0
    %358 = vmatpush.msra.mxu0 0.0
    %359 = vmatpush.msra.mxu0 0.0
    %360 = vmatpush.msra.mxu0 0.0
    %361 = vmatpush.msra.mxu0 0.0
    %362 = vmatpush.msra.mxu0 0.0
    %363 = vmatpush.msra.mxu0 0.0
    %364 = vmatpush.msra.mxu0 0.0
    %365 = vmatpush.msra.mxu0 0.0
    %366 = vmatpush.msra.mxu0 %v346
    %367 = vmatmul.f32.gmra.mxu0 %v349
    %v368 = vpop.f32.mrf.mxu0
    %v369 = vadd.f32 0.0, %v368
    %370 = vdwg.mxu0
    %371 = vrot.lane.b32.xlu0 %v130, 56
    %v372 = vpop.permute.xlu0 %371
    %v375 = vsel %vm141, %v344, 0
    %377 = vmatpush.msra.mxu0 0.0
    %378 = vmatpush.msra.mxu0 0.0
    %379 = vmatpush.msra.mxu0 0.0
    %380 = vmatpush.msra.mxu0 0.0
    %381 = vmatpush.msra.mxu0 0.0
    %382 = vmatpush.msra.mxu0 0.0
    %383 = vmatpush.msra.mxu0 0.0
    %384 = vmatpush.msra.mxu0 0.0
    %385 = vmatpush.msra.mxu0 0.0
    %386 = vmatpush.msra.mxu0 0.0
    %387 = vmatpush.msra.mxu0 0.0
    %388 = vmatpush.msra.mxu0 0.0
    %389 = vmatpush.msra.mxu0 0.0
    %390 = vmatpush.msra.mxu0 0.0
    %391 = vmatpush.msra.mxu0 0.0
    %392 = vmatpush.msra.mxu0 %v372
    %393 = vmatmul.f32.gmra.mxu0 %v375
    %v394 = vpop.f32.mrf.mxu0
    %v395 = vadd.f32 0.0, %v394
    %396 = vdwg.mxu0
    %397 = vrot.lane.b32.xlu0 %v127, 112
    %v398 = vpop.permute.xlu0 %397
    %399 = vrot.lane.b32.xlu0 %v127, 80
    %v400 = vpop.permute.xlu0 %399
    %v401 = vsel %vm141, %v398, 0
    %v403 = vsel %vm141, %v400, 0
    %405 = vmatpush.xpose.msra.mxu0 0.0
    %406 = vmatpush.xpose.msra.mxu0 0.0
    %407 = vmatpush.xpose.msra.mxu0 0.0
    %408 = vmatpush.xpose.msra.mxu0 0.0
    %409 = vmatpush.xpose.msra.mxu0 0.0
    %410 = vmatpush.xpose.msra.mxu0 0.0
    %411 = vmatpush.xpose.msra.mxu0 0.0
    %412 = vmatpush.xpose.msra.mxu0 0.0
    %413 = vmatpush.xpose.msra.mxu0 0.0
    %414 = vmatpush.xpose.msra.mxu0 0.0
    %415 = vmatpush.xpose.msra.mxu0 0.0
    %416 = vmatpush.xpose.msra.mxu0 0.0
    %417 = vmatpush.xpose.msra.mxu0 0.0
    %418 = vmatpush.xpose.msra.mxu0 0.0
    %419 = vmatpush.xpose.msra.mxu0 0.0
    %420 = vmatpush.xpose.msra.mxu0 %v403
    %421 = vmatmul.f32.gmra.mxu0 %v401
    %v422 = vpop.f32.mrf.mxu0
    %v423 = vadd.f32 %v134, %v422
    %424 = vdwg.mxu0
    %425 = vrot.lane.b32.xlu0 %v130, 112
    %v426 = vpop.permute.xlu0 %425
    %427 = vrot.lane.b32.xlu0 %v130, 80
    %v428 = vpop.permute.xlu0 %427
    %v429 = vsel %vm141, %v426, 0
    %v431 = vsel %vm141, %v428, 0
    %433 = vmatpush.xpose.msra.mxu0 0.0
    %434 = vmatpush.xpose.msra.mxu0 0.0
    %435 = vmatpush.xpose.msra.mxu0 0.0
    %436 = vmatpush.xpose.msra.mxu0 0.0
    %437 = vmatpush.xpose.msra.mxu0 0.0
    %438 = vmatpush.xpose.msra.mxu0 0.0
    %439 = vmatpush.xpose.msra.mxu0 0.0
    %440 = vmatpush.xpose.msra.mxu0 0.0
    %441 = vmatpush.xpose.msra.mxu0 0.0
    %442 = vmatpush.xpose.msra.mxu0 0.0
    %443 = vmatpush.xpose.msra.mxu0 0.0
    %444 = vmatpush.xpose.msra.mxu0 0.0
    %445 = vmatpush.xpose.msra.mxu0 0.0
    %446 = vmatpush.xpose.msra.mxu0 0.0
    %447 = vmatpush.xpose.msra.mxu0 0.0
    %448 = vmatpush.xpose.msra.mxu0 %v431
    %449 = vmatmul.f32.gmra.mxu0 %v429
    %v450 = vpop.f32.mrf.mxu0
    %v451 = vadd.f32 %v135, %v450
    %452 = vdwg.mxu0
    %v453 = vsel %vm141, %v423, -inf
    %454 = vmax.xlane.f32.xlu0 %v453
    %v455 = vpop.xlane.xlu0 %454
    %v456 = vsel %vm141, %v451, -inf
    %457 = vmax.xlane.f32.xlu0 %v456
    %v458 = vpop.xlane.xlu0 %457
    %v459 = vsub.f32 %v423, %v455
    %v460 = vsub.f32 %v451, %v458
    %v461 = vmul.f32 %v459, 1.442695
    %v462 = vpow.pop %v461
    %v463 = vmul.f32 %v460, 1.442695
    %v464 = vpow.pop %v463
    %v465 = vsel %vm141, %v462, 0.0
    %466 = vadd.xlane.f32.xlu0 %v465
    %v467 = vpop.xlane.xlu0 %466
    %v468 = vsel %vm141, %v464, 0.0
    %469 = vadd.xlane.f32.xlu0 %v468
    %v470 = vpop.xlane.xlu0 %469
    %v471 = vrcp.pop %v467
    %v472 = vrcp.pop %v470
    %v473 = vmul.f32 %v462, %v471
    %v474 = vmul.f32 %v464, %v472
    %475 = vrot.lane.b32.xlu0 %v127, 48
    %v476 = vpop.permute.xlu0 %475
    %v479 = vsel %vm141, %v473, 0
    %481 = vmatpush.msra.mxu0 0.0
    %482 = vmatpush.msra.mxu0 0.0
    %483 = vmatpush.msra.mxu0 0.0
    %484 = vmatpush.msra.mxu0 0.0
    %485 = vmatpush.msra.mxu0 0.0
    %486 = vmatpush.msra.mxu0 0.0
    %487 = vmatpush.msra.mxu0 0.0
    %488 = vmatpush.msra.mxu0 0.0
    %489 = vmatpush.msra.mxu0 0.0
    %490 = vmatpush.msra.mxu0 0.0
    %491 = vmatpush.msra.mxu0 0.0
    %492 = vmatpush.msra.mxu0 0.0
    %493 = vmatpush.msra.mxu0 0.0
    %494 = vmatpush.msra.mxu0 0.0
    %495 = vmatpush.msra.mxu0 0.0
    %496 = vmatpush.msra.mxu0 %v476
    %497 = vmatmul.f32.gmra.mxu0 %v479
    %v498 = vpop.f32.mrf.mxu0
    %v499 = vadd.f32 0.0, %v498
    %500 = vdwg.mxu0
    %501 = vrot.lane.b32.xlu0 %v130, 48
    %v502 = vpop.permute.xlu0 %501
    %v505 = vsel %vm141, %v474, 0
    %507 = vmatpush.msra.mxu0 0.0
    %508 = vmatpush.msra.mxu0 0.0
    %509 = vmatpush.msra.mxu0 0.0
    %510 = vmatpush.msra.mxu0 0.0
    %511 = vmatpush.msra.mxu0 0.0
    %512 = vmatpush.msra.mxu0 0.0
    %513 = vmatpush.msra.mxu0 0.0
    %514 = vmatpush.msra.mxu0 0.0
    %515 = vmatpush.msra.mxu0 0.0
    %516 = vmatpush.msra.mxu0 0.0
    %517 = vmatpush.msra.mxu0 0.0
    %518 = vmatpush.msra.mxu0 0.0
    %519 = vmatpush.msra.mxu0 0.0
    %520 = vmatpush.msra.mxu0 0.0
    %521 = vmatpush.msra.mxu0 0.0
    %522 = vmatpush.msra.mxu0 %v502
    %523 = vmatmul.f32.gmra.mxu0 %v505
    %v524 = vpop.f32.mrf.mxu0
    %v525 = vadd.f32 0.0, %v524
    %526 = vdwg.mxu0
    %527 = vrot.lane.b32.xlu0 %v127, 104
    %v528 = vpop.permute.xlu0 %527
    %529 = vrot.lane.b32.xlu0 %v127, 72
    %v530 = vpop.permute.xlu0 %529
    %v531 = vsel %vm141, %v528, 0
    %v533 = vsel %vm141, %v530, 0
    %535 = vmatpush.xpose.msra.mxu0 0.0
    %536 = vmatpush.xpose.msra.mxu0 0.0
    %537 = vmatpush.xpose.msra.mxu0 0.0
    %538 = vmatpush.xpose.msra.mxu0 0.0
    %539 = vmatpush.xpose.msra.mxu0 0.0
    %540 = vmatpush.xpose.msra.mxu0 0.0
    %541 = vmatpush.xpose.msra.mxu0 0.0
    %542 = vmatpush.xpose.msra.mxu0 0.0
    %543 = vmatpush.xpose.msra.mxu0 0.0
    %544 = vmatpush.xpose.msra.mxu0 0.0
    %545 = vmatpush.xpose.msra.mxu0 0.0
    %546 = vmatpush.xpose.msra.mxu0 0.0
    %547 = vmatpush.xpose.msra.mxu0 0.0
    %548 = vmatpush.xpose.msra.mxu0 0.0
    %549 = vmatpush.xpose.msra.mxu0 0.0
    %550 = vmatpush.xpose.msra.mxu0 %v533
    %551 = vmatmul.f32.gmra.mxu0 %v531
    %v552 = vpop.f32.mrf.mxu0
    %v553 = vadd.f32 %v134, %v552
    %554 = vdwg.mxu0
    %555 = vrot.lane.b32.xlu0 %v130, 104
    %v556 = vpop.permute.xlu0 %555
    %557 = vrot.lane.b32.xlu0 %v130, 72
    %v558 = vpop.permute.xlu0 %557
    %v559 = vsel %vm141, %v556, 0
    %v561 = vsel %vm141, %v558, 0
    %563 = vmatpush.xpose.msra.mxu0 0.0
    %564 = vmatpush.xpose.msra.mxu0 0.0
    %565 = vmatpush.xpose.msra.mxu0 0.0
    %566 = vmatpush.xpose.msra.mxu0 0.0
    %567 = vmatpush.xpose.msra.mxu0 0.0
    %568 = vmatpush.xpose.msra.mxu0 0.0
    %569 = vmatpush.xpose.msra.mxu0 0.0
    %570 = vmatpush.xpose.msra.mxu0 0.0
    %571 = vmatpush.xpose.msra.mxu0 0.0
    %572 = vmatpush.xpose.msra.mxu0 0.0
    %573 = vmatpush.xpose.msra.mxu0 0.0
    %574 = vmatpush.xpose.msra.mxu0 0.0
    %575 = vmatpush.xpose.msra.mxu0 0.0
    %576 = vmatpush.xpose.msra.mxu0 0.0
    %577 = vmatpush.xpose.msra.mxu0 0.0
    %578 = vmatpush.xpose.msra.mxu0 %v561
    %579 = vmatmul.f32.gmra.mxu0 %v559
    %v580 = vpop.f32.mrf.mxu0
    %v581 = vadd.f32 %v135, %v580
    %582 = vdwg.mxu0
    %v583 = vsel %vm141, %v553, -inf
    %584 = vmax.xlane.f32.xlu0 %v583
    %v585 = vpop.xlane.xlu0 %584
    %v586 = vsel %vm141, %v581, -inf
    %587 = vmax.xlane.f32.xlu0 %v586
    %v588 = vpop.xlane.xlu0 %587
    %v589 = vsub.f32 %v553, %v585
    %v590 = vsub.f32 %v581, %v588
    %v591 = vmul.f32 %v589, 1.442695
    %v592 = vpow.pop %v591
    %v593 = vmul.f32 %v590, 1.442695
    %v594 = vpow.pop %v593
    %v595 = vsel %vm141, %v592, 0.0
    %596 = vadd.xlane.f32.xlu0 %v595
    %v597 = vpop.xlane.xlu0 %596
    %v598 = vsel %vm141, %v594, 0.0
    %599 = vadd.xlane.f32.xlu0 %v598
    %v600 = vpop.xlane.xlu0 %599
    %v601 = vrcp.pop %v597
    %v602 = vrcp.pop %v600
    %v603 = vmul.f32 %v592, %v601
    %v604 = vmul.f32 %v594, %v602
    %605 = vrot.lane.b32.xlu0 %v127, 40
    %v606 = vpop.permute.xlu0 %605
    %v609 = vsel %vm141, %v603, 0
    %611 = vmatpush.msra.mxu0 0.0
    %612 = vmatpush.msra.mxu0 0.0
    %613 = vmatpush.msra.mxu0 0.0
    %614 = vmatpush.msra.mxu0 0.0
    %615 = vmatpush.msra.mxu0 0.0
    %616 = vmatpush.msra.mxu0 0.0
    %617 = vmatpush.msra.mxu0 0.0
    %618 = vmatpush.msra.mxu0 0.0
    %619 = vmatpush.msra.mxu0 0.0
    %620 = vmatpush.msra.mxu0 0.0
    %621 = vmatpush.msra.mxu0 0.0
    %622 = vmatpush.msra.mxu0 0.0
    %623 = vmatpush.msra.mxu0 0.0
    %624 = vmatpush.msra.mxu0 0.0
    %625 = vmatpush.msra.mxu0 0.0
    %626 = vmatpush.msra.mxu0 %v606
    %627 = vmatmul.f32.gmra.mxu0 %v609
    %v628 = vpop.f32.mrf.mxu0
    %v629 = vadd.f32 0.0, %v628
    %630 = vdwg.mxu0
    %631 = vrot.lane.b32.xlu0 %v130, 40
    %v632 = vpop.permute.xlu0 %631
    %v635 = vsel %vm141, %v604, 0
    %637 = vmatpush.msra.mxu0 0.0
    %638 = vmatpush.msra.mxu0 0.0
    %639 = vmatpush.msra.mxu0 0.0
    %640 = vmatpush.msra.mxu0 0.0
    %641 = vmatpush.msra.mxu0 0.0
    %642 = vmatpush.msra.mxu0 0.0
    %643 = vmatpush.msra.mxu0 0.0
    %644 = vmatpush.msra.mxu0 0.0
    %645 = vmatpush.msra.mxu0 0.0
    %646 = vmatpush.msra.mxu0 0.0
    %647 = vmatpush.msra.mxu0 0.0
    %648 = vmatpush.msra.mxu0 0.0
    %649 = vmatpush.msra.mxu0 0.0
    %650 = vmatpush.msra.mxu0 0.0
    %651 = vmatpush.msra.mxu0 0.0
    %652 = vmatpush.msra.mxu0 %v632
    %653 = vmatmul.f32.gmra.mxu0 %v635
    %v654 = vpop.f32.mrf.mxu0
    %v655 = vadd.f32 0.0, %v654
    %656 = vdwg.mxu0
    %659 = vrot.lane.b32.xlu0 %v369, 8
    %v660 = vpop.permute.xlu0 %659
    %661 = vrot.lane.b32.xlu0 %v395, 8
    %v662 = vpop.permute.xlu0 %661
    %667 = vrot.lane.b32.xlu0 %v499, 16
    %v668 = vpop.permute.xlu0 %667
    %669 = vrot.lane.b32.xlu0 %v525, 16
    %v670 = vpop.permute.xlu0 %669
    %675 = vrot.lane.b32.xlu0 %v629, 24
    %v676 = vpop.permute.xlu0 %675
    %677 = vrot.lane.b32.xlu0 %v655, 24
    %v678 = vpop.permute.xlu0 %677
    %v681 = vsel %vm141, %v239, %v660
    %v682 = vsel %vm141, %v265, %v662
    %vm683 = vcmask 130048
    %v684 = vsel %vm683, %v681, %v668
    %v685 = vsel %vm683, %v682, %v670
    %vm686 = vcmask 195584
    %v687 = vsel %vm686, %v684, %v676
    %v688 = vsel %vm686, %v685, %v678
    %v689 = vld [vmem:[%s6] sm:$0xff]
    %v690 = vld [vmem:[%s6 + $0x8] sm:$0xff]
    %v691 = vld [vmem:[%s6 + $0x10] sm:$0xff]
    %v692 = vld [vmem:[%s6 + $0x18] sm:$0xff]
    %v693 = vld [vmem:[%s7] sm:$0x1]
    %v695 = vperm.slane %v693, 0
    %v698 = vsel %vm102, %v687, 0
    %v701 = vsel %vm102, %v688, 0
    %703 = vmatpush.msra.mxu0 0.0
    %704 = vmatpush.msra.mxu0 0.0
    %705 = vmatpush.msra.mxu0 0.0
    %706 = vmatpush.msra.mxu0 0.0
    %707 = vmatpush.msra.mxu0 0.0
    %708 = vmatpush.msra.mxu0 0.0
    %709 = vmatpush.msra.mxu0 0.0
    %710 = vmatpush.msra.mxu0 0.0
    %711 = vmatpush.msra.mxu0 0.0
    %712 = vmatpush.msra.mxu0 0.0
    %713 = vmatpush.msra.mxu0 0.0
    %714 = vmatpush.msra.mxu0 0.0
    %715 = vmatpush.msra.mxu0 %v692
    %716 = vmatpush.msra.mxu0 %v691
    %717 = vmatpush.msra.mxu0 %v690
    %718 = vmatpush.msra.mxu0 %v689
    %719 = vmatmul.f32.gmra.mxu0 %v698
    %v720 = vpop.f32.mrf.mxu0
    %v721 = vadd.f32 %v695, %v720
    %722 = vmatmul.f32.gmra.mxu0 %v701
    %v723 = vpop.f32.mrf.mxu0
    %v724 = vadd.f32 %v695, %v723
    %725 = vdwg.mxu0
    %v726 = vadd.f32 %v78, %v721
    %v727 = vadd.f32 %v79, %v724
    %v728 = vld [vmem:[%s14] sm:$0x1]
    %v729 = vld [vmem:[%s15] sm:$0x1]
    %v730 = vsel %vm102, %v726, 0.0
    %731 = vadd.xlane.f32.xlu0 %v730
    %v732 = vpop.xlane.xlu0 %731
    %v733 = vsel %vm102, %v727, 0.0
    %734 = vadd.xlane.f32.xlu0 %v733
    %v735 = vpop.xlane.xlu0 %734
    %v736 = vrcp.pop 32.0
    %v737 = vmul.f32 32.0, %v736
    %v738 = vsub.f32 1.0, %v737
    %v739 = vmul.f32 %v736, %v738
    %v740 = vadd.f32 %v736, %v739
    %vm741 = vweird.f32 %v736
    %v742 = vsel %vm741, %v736, %v740
    %v743 = vmul.f32 %v732, %v742
    %v744 = vmul.f32 %v735, %v742
    %v745 = vsub.f32 %v726, %v743
    %v746 = vsub.f32 %v727, %v744
    %v747 = vmul.f32 %v745, %v745
    %v748 = vmul.f32 %v746, %v746
    %v749 = vsel %vm102, %v747, 0.0
    %750 = vadd.xlane.f32.xlu0 %v749
    %v751 = vpop.xlane.xlu0 %750
    %v752 = vsel %vm102, %v748, 0.0
    %753 = vadd.xlane.f32.xlu0 %v752
    %v754 = vpop.xlane.xlu0 %753
    %v755 = vmul.f32 %v751, %v742
    %v756 = vmul.f32 %v754, %v742
    %v757 = vadd.f32 %v755, 1e-05
    %v758 = vadd.f32 %v756, 1e-05
    %v759 = vrsqrt.pop %v757
    %v760 = vmul.f32 %v759, %v757
    %v761 = vmul.f32 %v760, %v759
    %v762 = vmul.f32 0.5, %v761
    %v763 = vsub.f32 1.5, %v762
    %v764 = vmul.f32 %v759, %v763
    %vm765 = vweird.f32 %v757
    %vm766 = vweird.f32 %v759
    %vm767 = vmor %vm765, %vm766
    %v768 = vsel %vm767, %v759, %v764
    %v769 = vrsqrt.pop %v758
    %v770 = vmul.f32 %v769, %v758
    %v771 = vmul.f32 %v770, %v769
    %v772 = vmul.f32 0.5, %v771
    %v773 = vsub.f32 1.5, %v772
    %v774 = vmul.f32 %v769, %v773
    %vm775 = vweird.f32 %v758
    %vm776 = vweird.f32 %v769
    %vm777 = vmor %vm775, %vm776
    %v778 = vsel %vm777, %v769, %v774
    %v779 = vmul.f32 %v745, %v768
    %v780 = vmul.f32 %v746, %v778
    %v782 = vperm.slane %v728, 0
    %v784 = vmul.f32 %v779, %v782
    %v785 = vmul.f32 %v780, %v782
    %v787 = vperm.slane %v729, 0
    %v789 = vadd.f32 %v784, %v787
    %v790 = vadd.f32 %v785, %v787
    %v791 = vld [vmem:[%s8] sm:$0xff]
    %v792 = vld [vmem:[%s8 + $0x8] sm:$0xff]
    %v793 = vld [vmem:[%s8 + $0x10] sm:$0xff]
    %v794 = vld [vmem:[%s8 + $0x18] sm:$0xff]
    %v795 = vld [vmem:[%s9] sm:$0x1]
    %v797 = vperm.slane %v795, 0
    %v800 = vsel %vm102, %v789, 0
    %v803 = vsel %vm102, %v790, 0
    %805 = vmatpush.msra.mxu0 0.0
    %806 = vmatpush.msra.mxu0 0.0
    %807 = vmatpush.msra.mxu0 0.0
    %808 = vmatpush.msra.mxu0 0.0
    %809 = vmatpush.msra.mxu0 0.0
    %810 = vmatpush.msra.mxu0 0.0
    %811 = vmatpush.msra.mxu0 0.0
    %812 = vmatpush.msra.mxu0 0.0
    %813 = vmatpush.msra.mxu0 0.0
    %814 = vmatpush.msra.mxu0 0.0
    %815 = vmatpush.msra.mxu0 0.0
    %816 = vmatpush.msra.mxu0 0.0
    %817 = vmatpush.msra.mxu0 %v794
    %818 = vmatpush.msra.mxu0 %v793
    %819 = vmatpush.msra.mxu0 %v792
    %820 = vmatpush.msra.mxu0 %v791
    %821 = vmatmul.f32.gmra.mxu0 %v800
    %v822 = vpop.f32.mrf.mxu0
    %v823 = vadd.f32 %v797, %v822
    %824 = vmatmul.f32.gmra.mxu0 %v803
    %v825 = vpop.f32.mrf.mxu0
    %v826 = vadd.f32 %v797, %v825
    %827 = vdwg.mxu0
    %v828 = vld [vmem:[%s10] sm:$0xff]
    %v829 = vld [vmem:[%s10 + $0x8] sm:$0xff]
    %v830 = vld [vmem:[%s10 + $0x10] sm:$0xff]
    %v831 = vld [vmem:[%s10 + $0x18] sm:$0xff]
    %v832 = vld [vmem:[%s11] sm:$0x1]
    %v834 = vperm.slane %v832, 0
    %v837 = vsel %vm102, %v80, 0
    %v840 = vsel %vm102, %v81, 0
    %842 = vmatpush.msra.mxu0 0.0
    %843 = vmatpush.msra.mxu0 0.0
    %844 = vmatpush.msra.mxu0 0.0
    %845 = vmatpush.msra.mxu0 0.0
    %846 = vmatpush.msra.mxu0 0.0
    %847 = vmatpush.msra.mxu0 0.0
    %848 = vmatpush.msra.mxu0 0.0
    %849 = vmatpush.msra.mxu0 0.0
    %850 = vmatpush.msra.mxu0 0.0
    %851 = vmatpush.msra.mxu0 0.0
    %852 = vmatpush.msra.mxu0 0.0
    %853 = vmatpush.msra.mxu0 0.0
    %854 = vmatpush.msra.mxu0 %v831
    %855 = vmatpush.msra.mxu0 %v830
    %856 = vmatpush.msra.mxu0 %v829
    %857 = vmatpush.msra.mxu0 %v828
    %858 = vmatmul.f32.gmra.mxu0 %v837
    %v859 = vpop.f32.mrf.mxu0
    %v860 = vadd.f32 %v834, %v859
    %861 = vmatmul.f32.gmra.mxu0 %v840
    %v862 = vpop.f32.mrf.mxu0
    %v863 = vadd.f32 %v834, %v862
    %864 = vdwg.mxu0
    %v867 = vperm.slane %v92, 0
    %v868 = vperm.slane %v93, 0
    %v872 = vsel %vm141, %v823, 0
    %v875 = vsel %vm141, %v860, 0
    %877 = vmatpush.xpose.msra.mxu0 0.0
    %878 = vmatpush.xpose.msra.mxu0 0.0
    %879 = vmatpush.xpose.msra.mxu0 0.0
    %880 = vmatpush.xpose.msra.mxu0 0.0
    %881 = vmatpush.xpose.msra.mxu0 0.0
    %882 = vmatpush.xpose.msra.mxu0 0.0
    %883 = vmatpush.xpose.msra.mxu0 0.0
    %884 = vmatpush.xpose.msra.mxu0 0.0
    %885 = vmatpush.xpose.msra.mxu0 0.0
    %886 = vmatpush.xpose.msra.mxu0 0.0
    %887 = vmatpush.xpose.msra.mxu0 0.0
    %888 = vmatpush.xpose.msra.mxu0 0.0
    %889 = vmatpush.xpose.msra.mxu0 0.0
    %890 = vmatpush.xpose.msra.mxu0 0.0
    %891 = vmatpush.xpose.msra.mxu0 0.0
    %892 = vmatpush.xpose.msra.mxu0 %v875
    %893 = vmatmul.f32.gmra.mxu0 %v872
    %v894 = vpop.f32.mrf.mxu0
    %v895 = vadd.f32 %v867, %v894
    %896 = vdwg.mxu0
    %v898 = vsel %vm141, %v826, 0
    %v901 = vsel %vm141, %v863, 0
    %903 = vmatpush.xpose.msra.mxu0 0.0
    %904 = vmatpush.xpose.msra.mxu0 0.0
    %905 = vmatpush.xpose.msra.mxu0 0.0
    %906 = vmatpush.xpose.msra.mxu0 0.0
    %907 = vmatpush.xpose.msra.mxu0 0.0
    %908 = vmatpush.xpose.msra.mxu0 0.0
    %909 = vmatpush.xpose.msra.mxu0 0.0
    %910 = vmatpush.xpose.msra.mxu0 0.0
    %911 = vmatpush.xpose.msra.mxu0 0.0
    %912 = vmatpush.xpose.msra.mxu0 0.0
    %913 = vmatpush.xpose.msra.mxu0 0.0
    %914 = vmatpush.xpose.msra.mxu0 0.0
    %915 = vmatpush.xpose.msra.mxu0 0.0
    %916 = vmatpush.xpose.msra.mxu0 0.0
    %917 = vmatpush.xpose.msra.mxu0 0.0
    %918 = vmatpush.xpose.msra.mxu0 %v901
    %919 = vmatmul.f32.gmra.mxu0 %v898
    %v920 = vpop.f32.mrf.mxu0
    %v921 = vadd.f32 %v868, %v920
    %922 = vdwg.mxu0
    %v923 = vsel %vm141, %v895, -inf
    %924 = vmax.xlane.f32.xlu0 %v923
    %v925 = vpop.xlane.xlu0 %924
    %v926 = vsel %vm141, %v921, -inf
    %927 = vmax.xlane.f32.xlu0 %v926
    %v928 = vpop.xlane.xlu0 %927
    %v929 = vsub.f32 %v895, %v925
    %v930 = vsub.f32 %v921, %v928
    %v931 = vmul.f32 %v929, 1.442695
    %v932 = vpow.pop %v931
    %v933 = vmul.f32 %v930, 1.442695
    %v934 = vpow.pop %v933
    %v935 = vsel %vm141, %v932, 0.0
    %936 = vadd.xlane.f32.xlu0 %v935
    %v937 = vpop.xlane.xlu0 %936
    %v938 = vsel %vm141, %v934, 0.0
    %939 = vadd.xlane.f32.xlu0 %v938
    %v940 = vpop.xlane.xlu0 %939
    %v941 = vrcp.pop %v937
    %v942 = vrcp.pop %v940
    %v943 = vmul.f32 %v932, %v941
    %v944 = vmul.f32 %v934, %v942
    %945 = vrot.lane.b32.xlu0 %v860, 96
    %v946 = vpop.permute.xlu0 %945
    %v949 = vsel %vm141, %v943, 0
    %951 = vmatpush.msra.mxu0 0.0
    %952 = vmatpush.msra.mxu0 0.0
    %953 = vmatpush.msra.mxu0 0.0
    %954 = vmatpush.msra.mxu0 0.0
    %955 = vmatpush.msra.mxu0 0.0
    %956 = vmatpush.msra.mxu0 0.0
    %957 = vmatpush.msra.mxu0 0.0
    %958 = vmatpush.msra.mxu0 0.0
    %959 = vmatpush.msra.mxu0 0.0
    %960 = vmatpush.msra.mxu0 0.0
    %961 = vmatpush.msra.mxu0 0.0
    %962 = vmatpush.msra.mxu0 0.0
    %963 = vmatpush.msra.mxu0 0.0
    %964 = vmatpush.msra.mxu0 0.0
    %965 = vmatpush.msra.mxu0 0.0
    %966 = vmatpush.msra.mxu0 %v946
    %967 = vmatmul.f32.gmra.mxu0 %v949
    %v968 = vpop.f32.mrf.mxu0
    %v969 = vadd.f32 0.0, %v968
    %970 = vdwg.mxu0
    %971 = vrot.lane.b32.xlu0 %v863, 96
    %v972 = vpop.permute.xlu0 %971
    %v975 = vsel %vm141, %v944, 0
    %977 = vmatpush.msra.mxu0 0.0
    %978 = vmatpush.msra.mxu0 0.0
    %979 = vmatpush.msra.mxu0 0.0
    %980 = vmatpush.msra.mxu0 0.0
    %981 = vmatpush.msra.mxu0 0.0
    %982 = vmatpush.msra.mxu0 0.0
    %983 = vmatpush.msra.mxu0 0.0
    %984 = vmatpush.msra.mxu0 0.0
    %985 = vmatpush.msra.mxu0 0.0
    %986 = vmatpush.msra.mxu0 0.0
    %987 = vmatpush.msra.mxu0 0.0
    %988 = vmatpush.msra.mxu0 0.0
    %989 = vmatpush.msra.mxu0 0.0
    %990 = vmatpush.msra.mxu0 0.0
    %991 = vmatpush.msra.mxu0 0.0
    %992 = vmatpush.msra.mxu0 %v972
    %993 = vmatmul.f32.gmra.mxu0 %v975
    %v994 = vpop.f32.mrf.mxu0
    %v995 = vadd.f32 0.0, %v994
    %996 = vdwg.mxu0
    %997 = vrot.lane.b32.xlu0 %v823, 120
    %v998 = vpop.permute.xlu0 %997
    %999 = vrot.lane.b32.xlu0 %v860, 120
    %v1000 = vpop.permute.xlu0 %999
    %v1001 = vsel %vm141, %v998, 0
    %v1003 = vsel %vm141, %v1000, 0
    %1005 = vmatpush.xpose.msra.mxu0 0.0
    %1006 = vmatpush.xpose.msra.mxu0 0.0
    %1007 = vmatpush.xpose.msra.mxu0 0.0
    %1008 = vmatpush.xpose.msra.mxu0 0.0
    %1009 = vmatpush.xpose.msra.mxu0 0.0
    %1010 = vmatpush.xpose.msra.mxu0 0.0
    %1011 = vmatpush.xpose.msra.mxu0 0.0
    %1012 = vmatpush.xpose.msra.mxu0 0.0
    %1013 = vmatpush.xpose.msra.mxu0 0.0
    %1014 = vmatpush.xpose.msra.mxu0 0.0
    %1015 = vmatpush.xpose.msra.mxu0 0.0
    %1016 = vmatpush.xpose.msra.mxu0 0.0
    %1017 = vmatpush.xpose.msra.mxu0 0.0
    %1018 = vmatpush.xpose.msra.mxu0 0.0
    %1019 = vmatpush.xpose.msra.mxu0 0.0
    %1020 = vmatpush.xpose.msra.mxu0 %v1003
    %1021 = vmatmul.f32.gmra.mxu0 %v1001
    %v1022 = vpop.f32.mrf.mxu0
    %v1023 = vadd.f32 %v867, %v1022
    %1024 = vdwg.mxu0
    %1025 = vrot.lane.b32.xlu0 %v826, 120
    %v1026 = vpop.permute.xlu0 %1025
    %1027 = vrot.lane.b32.xlu0 %v863, 120
    %v1028 = vpop.permute.xlu0 %1027
    %v1029 = vsel %vm141, %v1026, 0
    %v1031 = vsel %vm141, %v1028, 0
    %1033 = vmatpush.xpose.msra.mxu0 0.0
    %1034 = vmatpush.xpose.msra.mxu0 0.0
    %1035 = vmatpush.xpose.msra.mxu0 0.0
    %1036 = vmatpush.xpose.msra.mxu0 0.0
    %1037 = vmatpush.xpose.msra.mxu0 0.0
    %1038 = vmatpush.xpose.msra.mxu0 0.0
    %1039 = vmatpush.xpose.msra.mxu0 0.0
    %1040 = vmatpush.xpose.msra.mxu0 0.0
    %1041 = vmatpush.xpose.msra.mxu0 0.0
    %1042 = vmatpush.xpose.msra.mxu0 0.0
    %1043 = vmatpush.xpose.msra.mxu0 0.0
    %1044 = vmatpush.xpose.msra.mxu0 0.0
    %1045 = vmatpush.xpose.msra.mxu0 0.0
    %1046 = vmatpush.xpose.msra.mxu0 0.0
    %1047 = vmatpush.xpose.msra.mxu0 0.0
    %1048 = vmatpush.xpose.msra.mxu0 %v1031
    %1049 = vmatmul.f32.gmra.mxu0 %v1029
    %v1050 = vpop.f32.mrf.mxu0
    %v1051 = vadd.f32 %v868, %v1050
    %1052 = vdwg.mxu0
    %v1053 = vsel %vm141, %v1023, -inf
    %1054 = vmax.xlane.f32.xlu0 %v1053
    %v1055 = vpop.xlane.xlu0 %1054
    %v1056 = vsel %vm141, %v1051, -inf
    %1057 = vmax.xlane.f32.xlu0 %v1056
    %v1058 = vpop.xlane.xlu0 %1057
    %v1059 = vsub.f32 %v1023, %v1055
    %v1060 = vsub.f32 %v1051, %v1058
    %v1061 = vmul.f32 %v1059, 1.442695
    %v1062 = vpow.pop %v1061
    %v1063 = vmul.f32 %v1060, 1.442695
    %v1064 = vpow.pop %v1063
    %v1065 = vsel %vm141, %v1062, 0.0
    %1066 = vadd.xlane.f32.xlu0 %v1065
    %v1067 = vpop.xlane.xlu0 %1066
    %v1068 = vsel %vm141, %v1064, 0.0
    %1069 = vadd.xlane.f32.xlu0 %v1068
    %v1070 = vpop.xlane.xlu0 %1069
    %v1071 = vrcp.pop %v1067
    %v1072 = vrcp.pop %v1070
    %v1073 = vmul.f32 %v1062, %v1071
    %v1074 = vmul.f32 %v1064, %v1072
    %1075 = vrot.lane.b32.xlu0 %v860, 88
    %v1076 = vpop.permute.xlu0 %1075
    %v1079 = vsel %vm141, %v1073, 0
    %1081 = vmatpush.msra.mxu0 0.0
    %1082 = vmatpush.msra.mxu0 0.0
    %1083 = vmatpush.msra.mxu0 0.0
    %1084 = vmatpush.msra.mxu0 0.0
    %1085 = vmatpush.msra.mxu0 0.0
    %1086 = vmatpush.msra.mxu0 0.0
    %1087 = vmatpush.msra.mxu0 0.0
    %1088 = vmatpush.msra.mxu0 0.0
    %1089 = vmatpush.msra.mxu0 0.0
    %1090 = vmatpush.msra.mxu0 0.0
    %1091 = vmatpush.msra.mxu0 0.0
    %1092 = vmatpush.msra.mxu0 0.0
    %1093 = vmatpush.msra.mxu0 0.0
    %1094 = vmatpush.msra.mxu0 0.0
    %1095 = vmatpush.msra.mxu0 0.0
    %1096 = vmatpush.msra.mxu0 %v1076
    %1097 = vmatmul.f32.gmra.mxu0 %v1079
    %v1098 = vpop.f32.mrf.mxu0
    %v1099 = vadd.f32 0.0, %v1098
    %1100 = vdwg.mxu0
    %1101 = vrot.lane.b32.xlu0 %v863, 88
    %v1102 = vpop.permute.xlu0 %1101
    %v1105 = vsel %vm141, %v1074, 0
    %1107 = vmatpush.msra.mxu0 0.0
    %1108 = vmatpush.msra.mxu0 0.0
    %1109 = vmatpush.msra.mxu0 0.0
    %1110 = vmatpush.msra.mxu0 0.0
    %1111 = vmatpush.msra.mxu0 0.0
    %1112 = vmatpush.msra.mxu0 0.0
    %1113 = vmatpush.msra.mxu0 0.0
    %1114 = vmatpush.msra.mxu0 0.0
    %1115 = vmatpush.msra.mxu0 0.0
    %1116 = vmatpush.msra.mxu0 0.0
    %1117 = vmatpush.msra.mxu0 0.0
    %1118 = vmatpush.msra.mxu0 0.0
    %1119 = vmatpush.msra.mxu0 0.0
    %1120 = vmatpush.msra.mxu0 0.0
    %1121 = vmatpush.msra.mxu0 0.0
    %1122 = vmatpush.msra.mxu0 %v1102
    %1123 = vmatmul.f32.gmra.mxu0 %v1105
    %v1124 = vpop.f32.mrf.mxu0
    %v1125 = vadd.f32 0.0, %v1124
    %1126 = vdwg.mxu0
    %1127 = vrot.lane.b32.xlu0 %v823, 112
    %v1128 = vpop.permute.xlu0 %1127
    %1129 = vrot.lane.b32.xlu0 %v860, 112
    %v1130 = vpop.permute.xlu0 %1129
    %v1131 = vsel %vm141, %v1128, 0
    %v1133 = vsel %vm141, %v1130, 0
    %1135 = vmatpush.xpose.msra.mxu0 0.0
    %1136 = vmatpush.xpose.msra.mxu0 0.0
    %1137 = vmatpush.xpose.msra.mxu0 0.0
    %1138 = vmatpush.xpose.msra.mxu0 0.0
    %1139 = vmatpush.xpose.msra.mxu0 0.0
    %1140 = vmatpush.xpose.msra.mxu0 0.0
    %1141 = vmatpush.xpose.msra.mxu0 0.0
    %1142 = vmatpush.xpose.msra.mxu0 0.0
    %1143 = vmatpush.xpose.msra.mxu0 0.0
    %1144 = vmatpush.xpose.msra.mxu0 0.0
    %1145 = vmatpush.xpose.msra.mxu0 0.0
    %1146 = vmatpush.xpose.msra.mxu0 0.0
    %1147 = vmatpush.xpose.msra.mxu0 0.0
    %1148 = vmatpush.xpose.msra.mxu0 0.0
    %1149 = vmatpush.xpose.msra.mxu0 0.0
    %1150 = vmatpush.xpose.msra.mxu0 %v1133
    %1151 = vmatmul.f32.gmra.mxu0 %v1131
    %v1152 = vpop.f32.mrf.mxu0
    %v1153 = vadd.f32 %v867, %v1152
    %1154 = vdwg.mxu0
    %1155 = vrot.lane.b32.xlu0 %v826, 112
    %v1156 = vpop.permute.xlu0 %1155
    %1157 = vrot.lane.b32.xlu0 %v863, 112
    %v1158 = vpop.permute.xlu0 %1157
    %v1159 = vsel %vm141, %v1156, 0
    %v1161 = vsel %vm141, %v1158, 0
    %1163 = vmatpush.xpose.msra.mxu0 0.0
    %1164 = vmatpush.xpose.msra.mxu0 0.0
    %1165 = vmatpush.xpose.msra.mxu0 0.0
    %1166 = vmatpush.xpose.msra.mxu0 0.0
    %1167 = vmatpush.xpose.msra.mxu0 0.0
    %1168 = vmatpush.xpose.msra.mxu0 0.0
    %1169 = vmatpush.xpose.msra.mxu0 0.0
    %1170 = vmatpush.xpose.msra.mxu0 0.0
    %1171 = vmatpush.xpose.msra.mxu0 0.0
    %1172 = vmatpush.xpose.msra.mxu0 0.0
    %1173 = vmatpush.xpose.msra.mxu0 0.0
    %1174 = vmatpush.xpose.msra.mxu0 0.0
    %1175 = vmatpush.xpose.msra.mxu0 0.0
    %1176 = vmatpush.xpose.msra.mxu0 0.0
    %1177 = vmatpush.xpose.msra.mxu0 0.0
    %1178 = vmatpush.xpose.msra.mxu0 %v1161
    %1179 = vmatmul.f32.gmra.mxu0 %v1159
    %v1180 = vpop.f32.mrf.mxu0
    %v1181 = vadd.f32 %v868, %v1180
    %1182 = vdwg.mxu0
    %v1183 = vsel %vm141, %v1153, -inf
    %1184 = vmax.xlane.f32.xlu0 %v1183
    %v1185 = vpop.xlane.xlu0 %1184
    %v1186 = vsel %vm141, %v1181, -inf
    %1187 = vmax.xlane.f32.xlu0 %v1186
    %v1188 = vpop.xlane.xlu0 %1187
    %v1189 = vsub.f32 %v1153, %v1185
    %v1190 = vsub.f32 %v1181, %v1188
    %v1191 = vmul.f32 %v1189, 1.442695
    %v1192 = vpow.pop %v1191
    %v1193 = vmul.f32 %v1190, 1.442695
    %v1194 = vpow.pop %v1193
    %v1195 = vsel %vm141, %v1192, 0.0
    %1196 = vadd.xlane.f32.xlu0 %v1195
    %v1197 = vpop.xlane.xlu0 %1196
    %v1198 = vsel %vm141, %v1194, 0.0
    %1199 = vadd.xlane.f32.xlu0 %v1198
    %v1200 = vpop.xlane.xlu0 %1199
    %v1201 = vrcp.pop %v1197
    %v1202 = vrcp.pop %v1200
    %v1203 = vmul.f32 %v1192, %v1201
    %v1204 = vmul.f32 %v1194, %v1202
    %1205 = vrot.lane.b32.xlu0 %v860, 80
    %v1206 = vpop.permute.xlu0 %1205
    %v1209 = vsel %vm141, %v1203, 0
    %1211 = vmatpush.msra.mxu0 0.0
    %1212 = vmatpush.msra.mxu0 0.0
    %1213 = vmatpush.msra.mxu0 0.0
    %1214 = vmatpush.msra.mxu0 0.0
    %1215 = vmatpush.msra.mxu0 0.0
    %1216 = vmatpush.msra.mxu0 0.0
    %1217 = vmatpush.msra.mxu0 0.0
    %1218 = vmatpush.msra.mxu0 0.0
    %1219 = vmatpush.msra.mxu0 0.0
    %1220 = vmatpush.msra.mxu0 0.0
    %1221 = vmatpush.msra.mxu0 0.0
    %1222 = vmatpush.msra.mxu0 0.0
    %1223 = vmatpush.msra.mxu0 0.0
    %1224 = vmatpush.msra.mxu0 0.0
    %1225 = vmatpush.msra.mxu0 0.0
    %1226 = vmatpush.msra.mxu0 %v1206
    %1227 = vmatmul.f32.gmra.mxu0 %v1209
    %v1228 = vpop.f32.mrf.mxu0
    %v1229 = vadd.f32 0.0, %v1228
    %1230 = vdwg.mxu0
    %1231 = vrot.lane.b32.xlu0 %v863, 80
    %v1232 = vpop.permute.xlu0 %1231
    %v1235 = vsel %vm141, %v1204, 0
    %1237 = vmatpush.msra.mxu0 0.0
    %1238 = vmatpush.msra.mxu0 0.0
    %1239 = vmatpush.msra.mxu0 0.0
    %1240 = vmatpush.msra.mxu0 0.0
    %1241 = vmatpush.msra.mxu0 0.0
    %1242 = vmatpush.msra.mxu0 0.0
    %1243 = vmatpush.msra.mxu0 0.0
    %1244 = vmatpush.msra.mxu0 0.0
    %1245 = vmatpush.msra.mxu0 0.0
    %1246 = vmatpush.msra.mxu0 0.0
    %1247 = vmatpush.msra.mxu0 0.0
    %1248 = vmatpush.msra.mxu0 0.0
    %1249 = vmatpush.msra.mxu0 0.0
    %1250 = vmatpush.msra.mxu0 0.0
    %1251 = vmatpush.msra.mxu0 0.0
    %1252 = vmatpush.msra.mxu0 %v1232
    %1253 = vmatmul.f32.gmra.mxu0 %v1235
    %v1254 = vpop.f32.mrf.mxu0
    %v1255 = vadd.f32 0.0, %v1254
    %1256 = vdwg.mxu0
    %1257 = vrot.lane.b32.xlu0 %v823, 104
    %v1258 = vpop.permute.xlu0 %1257
    %1259 = vrot.lane.b32.xlu0 %v860, 104
    %v1260 = vpop.permute.xlu0 %1259
    %v1261 = vsel %vm141, %v1258, 0
    %v1263 = vsel %vm141, %v1260, 0
    %1265 = vmatpush.xpose.msra.mxu0 0.0
    %1266 = vmatpush.xpose.msra.mxu0 0.0
    %1267 = vmatpush.xpose.msra.mxu0 0.0
    %1268 = vmatpush.xpose.msra.mxu0 0.0
    %1269 = vmatpush.xpose.msra.mxu0 0.0
    %1270 = vmatpush.xpose.msra.mxu0 0.0
    %1271 = vmatpush.xpose.msra.mxu0 0.0
    %1272 = vmatpush.xpose.msra.mxu0 0.0
    %1273 = vmatpush.xpose.msra.mxu0 0.0
    %1274 = vmatpush.xpose.msra.mxu0 0.0
    %1275 = vmatpush.xpose.msra.mxu0 0.0
    %1276 = vmatpush.xpose.msra.mxu0 0.0
    %1277 = vmatpush.xpose.msra.mxu0 0.0
    %1278 = vmatpush.xpose.msra.mxu0 0.0
    %1279 = vmatpush.xpose.msra.mxu0 0.0
    %1280 = vmatpush.xpose.msra.mxu0 %v1263
    %1281 = vmatmul.f32.gmra.mxu0 %v1261
    %v1282 = vpop.f32.mrf.mxu0
    %v1283 = vadd.f32 %v867, %v1282
    %1284 = vdwg.mxu0
    %1285 = vrot.lane.b32.xlu0 %v826, 104
    %v1286 = vpop.permute.xlu0 %1285
    %1287 = vrot.lane.b32.xlu0 %v863, 104
    %v1288 = vpop.permute.xlu0 %1287
    %v1289 = vsel %vm141, %v1286, 0
    %v1291 = vsel %vm141, %v1288, 0
    %1293 = vmatpush.xpose.msra.mxu0 0.0
    %1294 = vmatpush.xpose.msra.mxu0 0.0
    %1295 = vmatpush.xpose.msra.mxu0 0.0
    %1296 = vmatpush.xpose.msra.mxu0 0.0
    %1297 = vmatpush.xpose.msra.mxu0 0.0
    %1298 = vmatpush.xpose.msra.mxu0 0.0
    %1299 = vmatpush.xpose.msra.mxu0 0.0
    %1300 = vmatpush.xpose.msra.mxu0 0.0
    %1301 = vmatpush.xpose.msra.mxu0 0.0
    %1302 = vmatpush.xpose.msra.mxu0 0.0
    %1303 = vmatpush.xpose.msra.mxu0 0.0
    %1304 = vmatpush.xpose.msra.mxu0 0.0
    %1305 = vmatpush.xpose.msra.mxu0 0.0
    %1306 = vmatpush.xpose.msra.mxu0 0.0
    %1307 = vmatpush.xpose.msra.mxu0 0.0
    %1308 = vmatpush.xpose.msra.mxu0 %v1291
    %1309 = vmatmul.f32.gmra.mxu0 %v1289
    %v1310 = vpop.f32.mrf.mxu0
    %v1311 = vadd.f32 %v868, %v1310
    %1312 = vdwg.mxu0
    %v1313 = vsel %vm141, %v1283, -inf
    %1314 = vmax.xlane.f32.xlu0 %v1313
    %v1315 = vpop.xlane.xlu0 %1314
    %v1316 = vsel %vm141, %v1311, -inf
    %1317 = vmax.xlane.f32.xlu0 %v1316
    %v1318 = vpop.xlane.xlu0 %1317
    %v1319 = vsub.f32 %v1283, %v1315
    %v1320 = vsub.f32 %v1311, %v1318
    %v1321 = vmul.f32 %v1319, 1.442695
    %v1322 = vpow.pop %v1321
    %v1323 = vmul.f32 %v1320, 1.442695
    %v1324 = vpow.pop %v1323
    %v1325 = vsel %vm141, %v1322, 0.0
    %1326 = vadd.xlane.f32.xlu0 %v1325
    %v1327 = vpop.xlane.xlu0 %1326
    %v1328 = vsel %vm141, %v1324, 0.0
    %1329 = vadd.xlane.f32.xlu0 %v1328
    %v1330 = vpop.xlane.xlu0 %1329
    %v1331 = vrcp.pop %v1327
    %v1332 = vrcp.pop %v1330
    %v1333 = vmul.f32 %v1322, %v1331
    %v1334 = vmul.f32 %v1324, %v1332
    %1335 = vrot.lane.b32.xlu0 %v860, 72
    %v1336 = vpop.permute.xlu0 %1335
    %v1339 = vsel %vm141, %v1333, 0
    %1341 = vmatpush.msra.mxu0 0.0
    %1342 = vmatpush.msra.mxu0 0.0
    %1343 = vmatpush.msra.mxu0 0.0
    %1344 = vmatpush.msra.mxu0 0.0
    %1345 = vmatpush.msra.mxu0 0.0
    %1346 = vmatpush.msra.mxu0 0.0
    %1347 = vmatpush.msra.mxu0 0.0
    %1348 = vmatpush.msra.mxu0 0.0
    %1349 = vmatpush.msra.mxu0 0.0
    %1350 = vmatpush.msra.mxu0 0.0
    %1351 = vmatpush.msra.mxu0 0.0
    %1352 = vmatpush.msra.mxu0 0.0
    %1353 = vmatpush.msra.mxu0 0.0
    %1354 = vmatpush.msra.mxu0 0.0
    %1355 = vmatpush.msra.mxu0 0.0
    %1356 = vmatpush.msra.mxu0 %v1336
    %1357 = vmatmul.f32.gmra.mxu0 %v1339
    %v1358 = vpop.f32.mrf.mxu0
    %v1359 = vadd.f32 0.0, %v1358
    %1360 = vdwg.mxu0
    %1361 = vrot.lane.b32.xlu0 %v863, 72
    %v1362 = vpop.permute.xlu0 %1361
    %v1365 = vsel %vm141, %v1334, 0
    %1367 = vmatpush.msra.mxu0 0.0
    %1368 = vmatpush.msra.mxu0 0.0
    %1369 = vmatpush.msra.mxu0 0.0
    %1370 = vmatpush.msra.mxu0 0.0
    %1371 = vmatpush.msra.mxu0 0.0
    %1372 = vmatpush.msra.mxu0 0.0
    %1373 = vmatpush.msra.mxu0 0.0
    %1374 = vmatpush.msra.mxu0 0.0
    %1375 = vmatpush.msra.mxu0 0.0
    %1376 = vmatpush.msra.mxu0 0.0
    %1377 = vmatpush.msra.mxu0 0.0
    %1378 = vmatpush.msra.mxu0 0.0
    %1379 = vmatpush.msra.mxu0 0.0
    %1380 = vmatpush.msra.mxu0 0.0
    %1381 = vmatpush.msra.mxu0 0.0
    %1382 = vmatpush.msra.mxu0 %v1362
    %1383 = vmatmul.f32.gmra.mxu0 %v1365
    %v1384 = vpop.f32.mrf.mxu0
    %v1385 = vadd.f32 0.0, %v1384
    %1386 = vdwg.mxu0
    %1389 = vrot.lane.b32.xlu0 %v1099, 8
    %v1390 = vpop.permute.xlu0 %1389
    %1391 = vrot.lane.b32.xlu0 %v1125, 8
    %v1392 = vpop.permute.xlu0 %1391
    %1397 = vrot.lane.b32.xlu0 %v1229, 16
    %v1398 = vpop.permute.xlu0 %1397
    %1399 = vrot.lane.b32.xlu0 %v1255, 16
    %v1400 = vpop.permute.xlu0 %1399
    %1405 = vrot.lane.b32.xlu0 %v1359, 24
    %v1406 = vpop.permute.xlu0 %1405
    %1407 = vrot.lane.b32.xlu0 %v1385, 24
    %v1408 = vpop.permute.xlu0 %1407
    %v1411 = vsel %vm141, %v969, %v1390
    %v1412 = vsel %vm141, %v995, %v1392
    %v1413 = vsel %vm683, %v1411, %v1398
    %v1414 = vsel %vm683, %v1412, %v1400
    %v1415 = vsel %vm686, %v1413, %v1406
    %v1416 = vsel %vm686, %v1414, %v1408
    %v1417 = vld [vmem:[%s12] sm:$0xff]
    %v1418 = vld [vmem:[%s12 + $0x8] sm:$0xff]
    %v1419 = vld [vmem:[%s12 + $0x10] sm:$0xff]
    %v1420 = vld [vmem:[%s12 + $0x18] sm:$0xff]
    %v1421 = vld [vmem:[%s13] sm:$0x1]
    %v1423 = vperm.slane %v1421, 0
    %v1426 = vsel %vm102, %v1415, 0
    %v1429 = vsel %vm102, %v1416, 0
    %1431 = vmatpush.msra.mxu0 0.0
    %1432 = vmatpush.msra.mxu0 0.0
    %1433 = vmatpush.msra.mxu0 0.0
    %1434 = vmatpush.msra.mxu0 0.0
    %1435 = vmatpush.msra.mxu0 0.0
    %1436 = vmatpush.msra.mxu0 0.0
    %1437 = vmatpush.msra.mxu0 0.0
    %1438 = vmatpush.msra.mxu0 0.0
    %1439 = vmatpush.msra.mxu0 0.0
    %1440 = vmatpush.msra.mxu0 0.0
    %1441 = vmatpush.msra.mxu0 0.0
    %1442 = vmatpush.msra.mxu0 0.0
    %1443 = vmatpush.msra.mxu0 %v1420
    %1444 = vmatpush.msra.mxu0 %v1419
    %1445 = vmatpush.msra.mxu0 %v1418
    %1446 = vmatpush.msra.mxu0 %v1417
    %1447 = vmatmul.f32.gmra.mxu0 %v1426
    %v1448 = vpop.f32.mrf.mxu0
    %v1449 = vadd.f32 %v1423, %v1448
    %1450 = vmatmul.f32.gmra.mxu0 %v1429
    %v1451 = vpop.f32.mrf.mxu0
    %v1452 = vadd.f32 %v1423, %v1451
    %1453 = vdwg.mxu0
    %v1454 = vadd.f32 %v789, %v1449
    %v1455 = vadd.f32 %v790, %v1452
    %v1456 = vld [vmem:[%s16] sm:$0x1]
    %v1457 = vld [vmem:[%s17] sm:$0x1]
    %v1458 = vsel %vm102, %v1454, 0.0
    %1459 = vadd.xlane.f32.xlu0 %v1458
    %v1460 = vpop.xlane.xlu0 %1459
    %v1461 = vsel %vm102, %v1455, 0.0
    %1462 = vadd.xlane.f32.xlu0 %v1461
    %v1463 = vpop.xlane.xlu0 %1462
    %v1464 = vmul.f32 %v1460, %v742
    %v1465 = vmul.f32 %v1463, %v742
    %v1466 = vsub.f32 %v1454, %v1464
    %v1467 = vsub.f32 %v1455, %v1465
    %v1468 = vmul.f32 %v1466, %v1466
    %v1469 = vmul.f32 %v1467, %v1467
    %v1470 = vsel %vm102, %v1468, 0.0
    %1471 = vadd.xlane.f32.xlu0 %v1470
    %v1472 = vpop.xlane.xlu0 %1471
    %v1473 = vsel %vm102, %v1469, 0.0
    %1474 = vadd.xlane.f32.xlu0 %v1473
    %v1475 = vpop.xlane.xlu0 %1474
    %v1476 = vmul.f32 %v1472, %v742
    %v1477 = vmul.f32 %v1475, %v742
    %v1478 = vadd.f32 %v1476, 1e-05
    %v1479 = vadd.f32 %v1477, 1e-05
    %v1480 = vrsqrt.pop %v1478
    %v1481 = vmul.f32 %v1480, %v1478
    %v1482 = vmul.f32 %v1481, %v1480
    %v1483 = vmul.f32 0.5, %v1482
    %v1484 = vsub.f32 1.5, %v1483
    %v1485 = vmul.f32 %v1480, %v1484
    %vm1486 = vweird.f32 %v1478
    %vm1487 = vweird.f32 %v1480
    %vm1488 = vmor %vm1486, %vm1487
    %v1489 = vsel %vm1488, %v1480, %v1485
    %v1490 = vrsqrt.pop %v1479
    %v1491 = vmul.f32 %v1490, %v1479
    %v1492 = vmul.f32 %v1491, %v1490
    %v1493 = vmul.f32 0.5, %v1492
    %v1494 = vsub.f32 1.5, %v1493
    %v1495 = vmul.f32 %v1490, %v1494
    %vm1496 = vweird.f32 %v1479
    %vm1497 = vweird.f32 %v1490
    %vm1498 = vmor %vm1496, %vm1497
    %v1499 = vsel %vm1498, %v1490, %v1495
    %v1500 = vmul.f32 %v1466, %v1489
    %v1501 = vmul.f32 %v1467, %v1499
    %v1503 = vperm.slane %v1456, 0
    %v1505 = vmul.f32 %v1500, %v1503
    %v1506 = vmul.f32 %v1501, %v1503
    %v1508 = vperm.slane %v1457, 0
    %v1510 = vadd.f32 %v1505, %v1508
    %v1511 = vadd.f32 %v1506, %v1508
    %v1512 = vld [vmem:[%s20] sm:$0xff]
    %v1513 = vld [vmem:[%s20 + $0x8] sm:$0xff]
    %v1514 = vld [vmem:[%s20 + $0x10] sm:$0xff]
    %v1515 = vld [vmem:[%s20 + $0x18] sm:$0xff]
    %v1516 = vld [vmem:[%s21] sm:$0x1]
    %v1518 = vperm.slane %v1516, 0
    %v1521 = vsel %vm102, %v1510, 0
    %v1524 = vsel %vm102, %v1511, 0
    %1526 = vmatpush.msra.mxu0 0.0
    %1527 = vmatpush.msra.mxu0 0.0
    %1528 = vmatpush.msra.mxu0 0.0
    %1529 = vmatpush.msra.mxu0 0.0
    %1530 = vmatpush.msra.mxu0 0.0
    %1531 = vmatpush.msra.mxu0 0.0
    %1532 = vmatpush.msra.mxu0 0.0
    %1533 = vmatpush.msra.mxu0 0.0
    %1534 = vmatpush.msra.mxu0 0.0
    %1535 = vmatpush.msra.mxu0 0.0
    %1536 = vmatpush.msra.mxu0 0.0
    %1537 = vmatpush.msra.mxu0 0.0
    %1538 = vmatpush.msra.mxu0 %v1515
    %1539 = vmatpush.msra.mxu0 %v1514
    %1540 = vmatpush.msra.mxu0 %v1513
    %1541 = vmatpush.msra.mxu0 %v1512
    %1542 = vmatmul.f32.gmra.mxu0 %v1521
    %v1543 = vpop.f32.mrf.mxu0
    %v1544 = vadd.f32 %v1518, %v1543
    %1545 = vmatmul.f32.gmra.mxu0 %v1524
    %v1546 = vpop.f32.mrf.mxu0
    %v1547 = vadd.f32 %v1518, %v1546
    %1548 = vdwg.mxu0
    %v1549 = vmax.f32 %v1544, 0.0
    %v1550 = vmax.f32 %v1547, 0.0
    %v1551 = vld [vmem:[%s22] sm:$0xff]
    %v1552 = vld [vmem:[%s22 + $0x8] sm:$0xff]
    %v1553 = vld [vmem:[%s22 + $0x10] sm:$0xff]
    %v1554 = vld [vmem:[%s22 + $0x18] sm:$0xff]
    %v1555 = vld [vmem:[%s22 + $0x20] sm:$0xff]
    %v1556 = vld [vmem:[%s22 + $0x28] sm:$0xff]
    %v1557 = vld [vmem:[%s22 + $0x30] sm:$0xff]
    %v1558 = vld [vmem:[%s22 + $0x38] sm:$0xff]
    %v1559 = vld [vmem:[%s23] sm:$0x1]
    %v1561 = vperm.slane %v1559, 0
    %vm1563 = vcmask 523264
    %v1565 = vsel %vm1563, %v1549, 0
    %v1568 = vsel %vm1563, %v1550, 0
    %1570 = vmatpush.msra.mxu0 0.0
    %1571 = vmatpush.msra.mxu0 0.0
    %1572 = vmatpush.msra.mxu0 0.0
    %1573 = vmatpush.msra.mxu0 0.0
    %1574 = vmatpush.msra.mxu0 0.0
    %1575 = vmatpush.msra.mxu0 0.0
    %1576 = vmatpush.msra.mxu0 0.0
    %1577 = vmatpush.msra.mxu0 0.0
    %1578 = vmatpush.msra.mxu0 %v1558
    %1579 = vmatpush.msra.mxu0 %v1557
    %1580 = vmatpush.msra.mxu0 %v1556
    %1581 = vmatpush.msra.mxu0 %v1555
    %1582 = vmatpush.msra.mxu0 %v1554
    %1583 = vmatpush.msra.mxu0 %v1553
    %1584 = vmatpush.msra.mxu0 %v1552
    %1585 = vmatpush.msra.mxu0 %v1551
    %1586 = vmatmul.f32.gmra.mxu0 %v1565
    %v1587 = vpop.f32.mrf.mxu0
    %v1588 = vadd.f32 %v1561, %v1587
    %1589 = vmatmul.f32.gmra.mxu0 %v1568
    %v1590 = vpop.f32.mrf.mxu0
    %v1591 = vadd.f32 %v1561, %v1590
    %1592 = vdwg.mxu0
    %v1593 = vadd.f32 %v1510, %v1588
    %v1594 = vadd.f32 %v1511, %v1591
    %v1595 = vld [vmem:[%s18] sm:$0x1]
    %v1596 = vld [vmem:[%s19] sm:$0x1]
    %v1597 = vsel %vm102, %v1593, 0.0
    %1598 = vadd.xlane.f32.xlu0 %v1597
    %v1599 = vpop.xlane.xlu0 %1598
    %v1600 = vsel %vm102, %v1594, 0.0
    %1601 = vadd.xlane.f32.xlu0 %v1600
    %v1602 = vpop.xlane.xlu0 %1601
    %v1603 = vmul.f32 %v1599, %v742
    %v1604 = vmul.f32 %v1602, %v742
    %v1605 = vsub.f32 %v1593, %v1603
    %v1606 = vsub.f32 %v1594, %v1604
    %v1607 = vmul.f32 %v1605, %v1605
    %v1608 = vmul.f32 %v1606, %v1606
    %v1609 = vsel %vm102, %v1607, 0.0
    %1610 = vadd.xlane.f32.xlu0 %v1609
    %v1611 = vpop.xlane.xlu0 %1610
    %v1612 = vsel %vm102, %v1608, 0.0
    %1613 = vadd.xlane.f32.xlu0 %v1612
    %v1614 = vpop.xlane.xlu0 %1613
    %v1615 = vmul.f32 %v1611, %v742
    %v1616 = vmul.f32 %v1614, %v742
    %v1617 = vadd.f32 %v1615, 1e-05
    %v1618 = vadd.f32 %v1616, 1e-05
    %v1619 = vrsqrt.pop %v1617
    %v1620 = vmul.f32 %v1619, %v1617
    %v1621 = vmul.f32 %v1620, %v1619
    %v1622 = vmul.f32 0.5, %v1621
    %v1623 = vsub.f32 1.5, %v1622
    %v1624 = vmul.f32 %v1619, %v1623
    %vm1625 = vweird.f32 %v1617
    %vm1626 = vweird.f32 %v1619
    %vm1627 = vmor %vm1625, %vm1626
    %v1628 = vsel %vm1627, %v1619, %v1624
    %v1629 = vrsqrt.pop %v1618
    %v1630 = vmul.f32 %v1629, %v1618
    %v1631 = vmul.f32 %v1630, %v1629
    %v1632 = vmul.f32 0.5, %v1631
    %v1633 = vsub.f32 1.5, %v1632
    %v1634 = vmul.f32 %v1629, %v1633
    %vm1635 = vweird.f32 %v1618
    %vm1636 = vweird.f32 %v1629
    %vm1637 = vmor %vm1635, %vm1636
    %v1638 = vsel %vm1637, %v1629, %v1634
    %v1639 = vmul.f32 %v1605, %v1628
    %v1640 = vmul.f32 %v1606, %v1638
    %v1642 = vperm.slane %v1595, 0
    %v1644 = vmul.f32 %v1639, %v1642
    %v1645 = vmul.f32 %v1640, %v1642
    %v1647 = vperm.slane %v1596, 0
    %v1649 = vadd.f32 %v1644, %v1647
    %v1650 = vadd.f32 %v1645, %v1647
    %1651 = vst.msk [vmem:[#allocation2] sm:$0xff] %vm102, %v1649
    %1652 = vst.msk [vmem:[#allocation2 + $0x8] sm:$0xff] %vm102, %v1650
    // Predicated region
    $region98: #{decoder_layer.1} parent=1 // pred_check
      _
    $region99: #{decoder_layer.1} parent=1 // pred_check_branch
      %1654 = sbr.rel (0) target = $region101
    $region100: #{decoder_layer.1} parent=1 // pred_region
      %1656 = vsyncadd [#allocation3], 0
      %s1657 = sshll.u32 [#allocation2], 4
      %s1658 = int_to_ptr.vmem [resolvable:$true] %s1657
      %s1659 = sshll.u32 %s24, 4
      %s1660 = int_to_ptr.hbm [resolvable:$true] %s1659
      %1665 = dma.vmem_to_hbm [thread:$0]  %s1658, 256, %s1660, [#allocation3], 128, 128, 8
    $region101: #{decoder_layer.1} parent=1 // pred_fallthru
      _
    // Predicated region
    $region102: #{decoder_layer.1} parent=1 // pred_check
      _
    $region103: #{decoder_layer.1} parent=1 // pred_check_branch
      %1667 = sbr.rel (0) target = $region105
    $region104: #{decoder_layer.1} parent=1 // pred_region
      %1669 = dma.done [#allocation3], 256
    $region105: #{decoder_layer.1} parent=1 // pred_fallthru
      _
    %1670 = vsyncpa [#allocation3], 1

</llo_original>
